<compile_context>
chip_gen: v6e
topology: v6e:2x2x1
jax: 0.10.0
libtpu: 0.0.40
codegen_flags: <defaults>
</compile_context>

<pallas_src>
import functools

import jax
import jax.numpy as jnp
from jax import lax
from jax.experimental import pallas as pl
from jax.experimental.pallas import tpu as pltpu


def _lstm_fc_kernel(x_ref, w_ih_ref, w_hh_ref, b_ref, w_out_ref, b_out_ref,
                    out_ref, gx_ref, *, seq_len, b_blk, hidden_pad, unroll):
    """One grid step == full recurrence for one (padded) batch block."""
    Hp = hidden_pad
    mm_dtype = w_hh_ref.dtype

    # ---- Phase 1: hoisted input projection for ALL time steps as one GEMM ----
    # x block rows are (t, local_batch); bias (b_ih + b_hh) folded in here once.
    gx_ref[...] = (
        jnp.dot(x_ref[0], w_ih_ref[...], preferred_element_type=jnp.float32)
        + b_ref[...]
    )

    # ---- Phase 2: serial recurrence; h/c live in vregs as loop carries ----
    def step(t, carry):
        h, c = carry
        row = pl.multiple_of(t * b_blk, 8)            # b_blk is a multiple of 8
        gates = gx_ref[pl.ds(row, b_blk), :] + jnp.dot(
            h.astype(mm_dtype), w_hh_ref[...],
            preferred_element_type=jnp.float32)       # (b_blk, 4*Hp)
        # PyTorch gate order [i, f, g, o]; Hp is a multiple of 128 so each slice
        # is whole-vreg (no cross-lane shuffles).
        i_g = jax.nn.sigmoid(gates[:, 0 * Hp:1 * Hp])
        f_g = jax.nn.sigmoid(gates[:, 1 * Hp:2 * Hp])
        g_g = jnp.tanh(gates[:, 2 * Hp:3 * Hp])
        o_g = jax.nn.sigmoid(gates[:, 3 * Hp:4 * Hp])
        c_new = f_g * c + i_g * g_g
        h_new = o_g * jnp.tanh(c_new)
        return h_new, c_new

    h0 = jnp.zeros((b_blk, Hp), jnp.float32)
    c0 = jnp.zeros((b_blk, Hp), jnp.float32)
    h_fin, _ = lax.fori_loop(0, seq_len, step, (h0, c0), unroll=unroll)

    # fc_layers == 1 in the reference script -> no intermediate Linear+ReLU.
    # TODO(synk): if fc_layers > 1, add the Linear+ReLU stack on h_fin here.
    out_ref[0] = (
        jnp.dot(h_fin.astype(mm_dtype), w_out_ref[...],
                preferred_element_type=jnp.float32)
        + b_out_ref[...]
    ).astype(out_ref.dtype)


def _round_up(x, m):
    return ((x + m - 1) // m) * m


def _pad_gate_cols(w, H, Hp):
    """(rows, 4H) -> (rows, 4*Hp): gate block k lands at [k*Hp : k*Hp + H]."""
    rows = w.shape[0]
    out = jnp.zeros((rows, 4, Hp), w.dtype).at[:, :, :H].set(w.reshape(rows, 4, H))
    return out.reshape(rows, 4 * Hp)


def lstm_model_forward(x, params, *, batch_block=None, matmul_dtype=jnp.float32):
    """x: (batch, seq, input_dim) float32  ->  (batch, output_dim) float32."""
    B, T, D_in = x.shape
    H = params["w_hh"].shape[1]          # lstm.weight_hh_l0: (4H, H)
    D_out = params["w_out"].shape[0]     # fc_out.weight: (out, H)

    Hp = _round_up(H, 128)               # lane-aligned gate blocks
    G = 4 * Hp
    f32 = jnp.float32

    # Batch: pad to a multiple of 8 sublanes; block it so independent
    # recurrences can be sharded across TensorCores (time axis is serial).
    if batch_block is None:
        batch_block = min(_round_up(B, 8), 128)
    b_blk = _round_up(batch_block, 8)
    Bp = _round_up(B, b_blk)
    nb = Bp // b_blk

    # ---- weights / biases: pre-transpose + pad once (cheap XLA-side work) ----
    w_ih_p = _pad_gate_cols(params["w_ih"].T.astype(f32), H, Hp)          # (D_in, G)
    w_hh_p = jnp.zeros((Hp, G), f32).at[:H, :].set(
        _pad_gate_cols(params["w_hh"].T.astype(f32), H, Hp))              # (Hp, G)
    b_p = _pad_gate_cols(
        (params["b_ih"] + params["b_hh"]).reshape(1, 4 * H).astype(f32), H, Hp)  # (1, G)
    w_out_p = jnp.zeros((Hp, D_out), f32).at[:H, :].set(
        params["w_out"].T.astype(f32))                                    # (Hp, D_out)
    b_out = params["b_out"].reshape(1, D_out).astype(f32)

    w_ih_p = w_ih_p.astype(matmul_dtype)
    w_hh_p = w_hh_p.astype(matmul_dtype)
    w_out_p = w_out_p.astype(matmul_dtype)

    # ---- x: pad batch, build per-block time-major row slabs (t, local_b) ----
    x_p = jnp.zeros((Bp, T, D_in), f32).at[:B].set(x.astype(f32))
    x_blk = (x_p.transpose(1, 0, 2)                   # (T, Bp, D_in)
                .reshape(T, nb, b_blk, D_in)
                .transpose(1, 0, 2, 3)                # (nb, T, b_blk, D_in)
                .reshape(nb, T * b_blk, D_in)
                .astype(matmul_dtype))

    # VMEM budget (explicit, with headroom; capped for v7x's 64 MiB VMEM).
    mm_bytes = jnp.dtype(matmul_dtype).itemsize
    est = (2 * (T * b_blk * D_in * mm_bytes                    # x block (dbl-buffered)
                + (D_in * G + Hp * G + Hp * D_out) * mm_bytes  # weights
                + (G + D_out) * 4                              # biases
                + b_blk * D_out * 4)                           # output block
           + T * b_blk * G * 4)                                # gates_x scratch
    vmem_limit = int(min(max(2 * est, 16 * 1024 * 1024), 64 * 1024 * 1024))

    kernel = functools.partial(
        _lstm_fc_kernel, seq_len=T, b_blk=b_blk, hidden_pad=Hp,
        unroll=bool(T <= 32))

    out_p = pl.pallas_call(
        kernel,
        out_shape=jax.ShapeDtypeStruct((nb, b_blk, D_out), jnp.float32),
        grid_spec=pltpu.PrefetchScalarGridSpec(
            num_scalar_prefetch=0,
            grid=(nb,),
            in_specs=[
                pl.BlockSpec((1, T * b_blk, D_in), lambda b: (b, 0, 0)),  # x block
                pl.BlockSpec((D_in, G), lambda b: (0, 0)),                # W_ih^T
                pl.BlockSpec((Hp, G), lambda b: (0, 0)),                  # W_hh^T
                pl.BlockSpec((1, G), lambda b: (0, 0)),                   # b_ih+b_hh
                pl.BlockSpec((Hp, D_out), lambda b: (0, 0)),              # W_out^T
                pl.BlockSpec((1, D_out), lambda b: (0, 0)),               # b_out
            ],
            out_specs=pl.BlockSpec((1, b_blk, D_out), lambda b: (b, 0, 0)),
            scratch_shapes=[
                pltpu.VMEM((T * b_blk, G), jnp.float32),   # hoisted input gates
            ],
        ),
        compiler_params=pltpu.CompilerParams(
            dimension_semantics=("parallel",),
            vmem_limit_bytes=vmem_limit,
        ),
    )(x_blk, w_ih_p, w_hh_p, b_p, w_out_p, b_out)

    return out_p.reshape(Bp, D_out)[:B]


def _reference_forward(x, params):
    """Pure-JAX reference matching torch.nn.LSTM + Linear semantics."""
    B, T, D_in = x.shape
    H = params["w_hh"].shape[1]
    h = jnp.zeros((B, H), jnp.float32)
    c = jnp.zeros((B, H), jnp.float32)
    for t in range(T):
        gates = (x[:, t, :] @ params["w_ih"].T + params["b_ih"]
                 + h @ params["w_hh"].T + params["b_hh"])
        i = jax.nn.sigmoid(gates[:, 0 * H:1 * H])
        f = jax.nn.sigmoid(gates[:, 1 * H:2 * H])
        g = jnp.tanh(gates[:, 2 * H:3 * H])
        o = jax.nn.sigmoid(gates[:, 3 * H:4 * H])
        c = f * c + i * g
        h = o * jnp.tanh(c)
    return h @ params["w_out"].T + params["b_out"]


def init_params(key, input_dim, hidden_dim, output_dim):
    """Deterministic init matching PyTorch shapes (uniform +-1/sqrt(H))."""
    ks = jax.random.split(key, 6)
    bound = 1.0 / jnp.sqrt(jnp.float32(hidden_dim))
    u = lambda k, shape: jax.random.uniform(k, shape, jnp.float32, -bound, bound)
    return {
        "w_ih": u(ks[0], (4 * hidden_dim, input_dim)),   # lstm.weight_ih_l0
        "w_hh": u(ks[1], (4 * hidden_dim, hidden_dim)),  # lstm.weight_hh_l0
        "b_ih": u(ks[2], (4 * hidden_dim,)),             # lstm.bias_ih_l0
        "b_hh": u(ks[3], (4 * hidden_dim,)),             # lstm.bias_hh_l0
        "w_out": u(ks[4], (output_dim, hidden_dim)),     # fc_out.weight
        "b_out": u(ks[5], (output_dim,)),                # fc_out.bias
    }


if __name__ == "__main__":
    batch, seq, input_dim, hidden_dim, output_dim = 2, 8, 16, 32, 4

    key = jax.random.PRNGKey(0)
    k_x, k_p = jax.random.split(key)
    x = jax.random.normal(k_x, (batch, seq, input_dim), jnp.float32)
    params = init_params(k_p, input_dim, hidden_dim, output_dim)

    out = lstm_model_forward(x, params)
    out = jax.block_until_ready(out)

    ref = _reference_forward(x, params)
    assert out.shape == (batch, output_dim)
    assert jnp.allclose(out, ref, atol=2e-4, rtol=2e-4), (
        f"max abs diff = {jnp.max(jnp.abs(out - ref))}")

    print("KERNEL_OK")
</pallas_src>

<mosaic_0001>
module attributes {stable_mosaic.version = 11 : i64} {
  func.func @_lstm_fc_kernel(%arg0: i32, %arg1: memref<1x64x16xf32, #tpu.memory_space<vmem>>, %arg2: memref<16x512xf32, #tpu.memory_space<vmem>>, %arg3: memref<128x512xf32, #tpu.memory_space<vmem>>, %arg4: memref<1x512xf32, #tpu.memory_space<vmem>>, %arg5: memref<128x4xf32, #tpu.memory_space<vmem>>, %arg6: memref<1x4xf32, #tpu.memory_space<vmem>>, %arg7: memref<1x8x4xf32, #tpu.memory_space<vmem>>, %arg8: memref<64x512xf32, #tpu.memory_space<vmem>>) attributes {dimension_semantics = [#tpu.dimension_semantics<parallel>], iteration_bounds = array<i64: 1>, scalar_prefetch = 0 : i64, scratch_operands = 1 : i64, tpu.core_type = #tpu.core_type<tc>, window_params = [{transform_indices = @transform_0, window_bounds = array<i64: 1, 64, 16>}, {pipeline_mode = #tpu.pipeline_mode<synchronous>, transform_indices = @transform_1, window_bounds = array<i64: 16, 512>}, {pipeline_mode = #tpu.pipeline_mode<synchronous>, transform_indices = @transform_2, window_bounds = array<i64: 128, 512>}, {pipeline_mode = #tpu.pipeline_mode<synchronous>, transform_indices = @transform_3, window_bounds = array<i64: 1, 512>}, {pipeline_mode = #tpu.pipeline_mode<synchronous>, transform_indices = @transform_4, window_bounds = array<i64: 128, 4>}, {pipeline_mode = #tpu.pipeline_mode<synchronous>, transform_indices = @transform_5, window_bounds = array<i64: 1, 4>}, {transform_indices = @transform_6, window_bounds = array<i64: 1, 8, 4>}]} {
    %c0 = arith.constant 0 : index
    %c0_0 = arith.constant 0 : index
    %c0_1 = arith.constant 0 : index
    %0 = vector.load %arg1[%c0, %c0_0, %c0_1] : memref<1x64x16xf32, #tpu.memory_space<vmem>>, vector<1x64x16xf32>
    %1 = vector.shape_cast %0 : vector<1x64x16xf32> to vector<64x16xf32>
    %c0_2 = arith.constant 0 : index
    %c0_3 = arith.constant 0 : index
    %2 = vector.load %arg2[%c0_2, %c0_3] : memref<16x512xf32, #tpu.memory_space<vmem>>, vector<16x512xf32>
    %cst = arith.constant dense<0.000000e+00> : vector<64x512xf32>
    %3 = tpu.matmul %1, %2, %cst {dimension_numbers = #tpu.dot_dimension_numbers<[1], [0], [0], [1], [0, 0, 1, 1], [], []>} : vector<64x16xf32>, vector<16x512xf32>, vector<64x512xf32> -> vector<64x512xf32>
    %c0_4 = arith.constant 0 : index
    %c0_5 = arith.constant 0 : index
    %4 = vector.load %arg4[%c0_4, %c0_5] : memref<1x512xf32, #tpu.memory_space<vmem>>, vector<1x512xf32>
    %5 = vector.broadcast %4 : vector<1x512xf32> to vector<64x512xf32>
    %6 = arith.addf %3, %5 : vector<64x512xf32>
    %c0_6 = arith.constant 0 : index
    %c0_7 = arith.constant 0 : index
    %7 = vector.load %arg8[%c0_6, %c0_7] : memref<64x512xf32, #tpu.memory_space<vmem>>, vector<64x512xf32>
    tpu.vector_store %arg8[%c0_6, %c0_7], %6 {strides = array<i32>} : memref<64x512xf32, #tpu.memory_space<vmem>>, vector<64x512xf32>,
    %cst_8 = arith.constant 0.000000e+00 : f32
    %8 = vector.broadcast %cst_8 : f32 to vector<8x128xf32>
    %cst_9 = arith.constant 0.000000e+00 : f32
    %9 = vector.broadcast %cst_9 : f32 to vector<8x128xf32>
    %c0_i32 = arith.constant 0 : i32
    %c8_i32 = arith.constant 8 : i32
    %10 = arith.muli %c0_i32, %c8_i32 : i32
    %11 = tpu.assume_multiple %10, 8 : i32
    %12 = arith.index_cast %11 : i32 to index
    %c0_10 = arith.constant 0 : index
    %13 = vector.load %arg8[%12, %c0_10] : memref<64x512xf32, #tpu.memory_space<vmem>>, vector<8x512xf32>
    %c0_11 = arith.constant 0 : index
    %c0_12 = arith.constant 0 : index
    %14 = vector.load %arg3[%c0_11, %c0_12] : memref<128x512xf32, #tpu.memory_space<vmem>>, vector<128x512xf32>
    %cst_13 = arith.constant dense<0.000000e+00> : vector<8x512xf32>
    %15 = tpu.matmul %8, %14, %cst_13 {dimension_numbers = #tpu.dot_dimension_numbers<[1], [0], [0], [1], [0, 0, 1, 1], [], []>} : vector<8x128xf32>, vector<128x512xf32>, vector<8x512xf32> -> vector<8x512xf32>
    %16 = arith.addf %13, %15 : vector<8x512xf32>
    %17 = vector.extract_strided_slice %16 {offsets = [0, 0], sizes = [8, 128], strides = [1, 1]} : vector<8x512xf32> to vector<8x128xf32>
    %18 = arith.negf %17 : vector<8x128xf32>
    %19 = math.exp %18 : vector<8x128xf32>
    %cst_14 = arith.constant 1.000000e+00 : f32
    %20 = vector.broadcast %cst_14 : f32 to vector<8x128xf32>
    %21 = arith.addf %20, %19 : vector<8x128xf32>
    %22 = arith.divf %20, %21 : vector<8x128xf32>
    %23 = vector.extract_strided_slice %16 {offsets = [0, 128], sizes = [8, 128], strides = [1, 1]} : vector<8x512xf32> to vector<8x128xf32>
    %24 = arith.negf %23 : vector<8x128xf32>
    %25 = math.exp %24 : vector<8x128xf32>
    %cst_15 = arith.constant 1.000000e+00 : f32
    %26 = vector.broadcast %cst_15 : f32 to vector<8x128xf32>
    %27 = arith.addf %26, %25 : vector<8x128xf32>
    %28 = arith.divf %26, %27 : vector<8x128xf32>
    %29 = vector.extract_strided_slice %16 {offsets = [0, 256], sizes = [8, 128], strides = [1, 1]} : vector<8x512xf32> to vector<8x128xf32>
    %30 = math.tanh %29 : vector<8x128xf32>
    %31 = vector.extract_strided_slice %16 {offsets = [0, 384], sizes = [8, 128], strides = [1, 1]} : vector<8x512xf32> to vector<8x128xf32>
    %32 = arith.negf %31 : vector<8x128xf32>
    %33 = math.exp %32 : vector<8x128xf32>
    %cst_16 = arith.constant 1.000000e+00 : f32
    %34 = vector.broadcast %cst_16 : f32 to vector<8x128xf32>
    %35 = arith.addf %34, %33 : vector<8x128xf32>
    %36 = arith.divf %34, %35 : vector<8x128xf32>
    %37 = arith.mulf %28, %9 : vector<8x128xf32>
    %38 = arith.mulf %22, %30 : vector<8x128xf32>
    %39 = arith.addf %37, %38 : vector<8x128xf32>
    %40 = math.tanh %39 : vector<8x128xf32>
    %41 = arith.mulf %36, %40 : vector<8x128xf32>
    %c1_i32 = arith.constant 1 : i32
    %c8_i32_17 = arith.constant 8 : i32
    %42 = arith.muli %c1_i32, %c8_i32_17 : i32
    %43 = tpu.assume_multiple %42, 8 : i32
    %44 = arith.index_cast %43 : i32 to index
    %c0_18 = arith.constant 0 : index
    %45 = vector.load %arg8[%44, %c0_18] : memref<64x512xf32, #tpu.memory_space<vmem>>, vector<8x512xf32>
    %c0_19 = arith.constant 0 : index
    %c0_20 = arith.constant 0 : index
    %46 = vector.load %arg3[%c0_19, %c0_20] : memref<128x512xf32, #tpu.memory_space<vmem>>, vector<128x512xf32>
    %cst_21 = arith.constant dense<0.000000e+00> : vector<8x512xf32>
    %47 = tpu.matmul %41, %46, %cst_21 {dimension_numbers = #tpu.dot_dimension_numbers<[1], [0], [0], [1], [0, 0, 1, 1], [], []>} : vector<8x128xf32>, vector<128x512xf32>, vector<8x512xf32> -> vector<8x512xf32>
    %48 = arith.addf %45, %47 : vector<8x512xf32>
    %49 = vector.extract_strided_slice %48 {offsets = [0, 0], sizes = [8, 128], strides = [1, 1]} : vector<8x512xf32> to vector<8x128xf32>
    %50 = arith.negf %49 : vector<8x128xf32>
    %51 = math.exp %50 : vector<8x128xf32>
    %cst_22 = arith.constant 1.000000e+00 : f32
    %52 = vector.broadcast %cst_22 : f32 to vector<8x128xf32>
    %53 = arith.addf %52, %51 : vector<8x128xf32>
    %54 = arith.divf %52, %53 : vector<8x128xf32>
    %55 = vector.extract_strided_slice %48 {offsets = [0, 128], sizes = [8, 128], strides = [1, 1]} : vector<8x512xf32> to vector<8x128xf32>
    %56 = arith.negf %55 : vector<8x128xf32>
    %57 = math.exp %56 : vector<8x128xf32>
    %cst_23 = arith.constant 1.000000e+00 : f32
    %58 = vector.broadcast %cst_23 : f32 to vector<8x128xf32>
    %59 = arith.addf %58, %57 : vector<8x128xf32>
    %60 = arith.divf %58, %59 : vector<8x128xf32>
    %61 = vector.extract_strided_slice %48 {offsets = [0, 256], sizes = [8, 128], strides = [1, 1]} : vector<8x512xf32> to vector<8x128xf32>
    %62 = math.tanh %61 : vector<8x128xf32>
    %63 = vector.extract_strided_slice %48 {offsets = [0, 384], sizes = [8, 128], strides = [1, 1]} : vector<8x512xf32> to vector<8x128xf32>
    %64 = arith.negf %63 : vector<8x128xf32>
    %65 = math.exp %64 : vector<8x128xf32>
    %cst_24 = arith.constant 1.000000e+00 : f32
    %66 = vector.broadcast %cst_24 : f32 to vector<8x128xf32>
    %67 = arith.addf %66, %65 : vector<8x128xf32>
    %68 = arith.divf %66, %67 : vector<8x128xf32>
    %69 = arith.mulf %60, %39 : vector<8x128xf32>
    %70 = arith.mulf %54, %62 : vector<8x128xf32>
    %71 = arith.addf %69, %70 : vector<8x128xf32>
    %72 = math.tanh %71 : vector<8x128xf32>
    %73 = arith.mulf %68, %72 : vector<8x128xf32>
    %c2_i32 = arith.constant 2 : i32
    %c8_i32_25 = arith.constant 8 : i32
    %74 = arith.muli %c2_i32, %c8_i32_25 : i32
    %75 = tpu.assume_multiple %74, 8 : i32
    %76 = arith.index_cast %75 : i32 to index
    %c0_26 = arith.constant 0 : index
    %77 = vector.load %arg8[%76, %c0_26] : memref<64x512xf32, #tpu.memory_space<vmem>>, vector<8x512xf32>
    %c0_27 = arith.constant 0 : index
    %c0_28 = arith.constant 0 : index
    %78 = vector.load %arg3[%c0_27, %c0_28] : memref<128x512xf32, #tpu.memory_space<vmem>>, vector<128x512xf32>
    %cst_29 = arith.constant dense<0.000000e+00> : vector<8x512xf32>
    %79 = tpu.matmul %73, %78, %cst_29 {dimension_numbers = #tpu.dot_dimension_numbers<[1], [0], [0], [1], [0, 0, 1, 1], [], []>} : vector<8x128xf32>, vector<128x512xf32>, vector<8x512xf32> -> vector<8x512xf32>
    %80 = arith.addf %77, %79 : vector<8x512xf32>
    %81 = vector.extract_strided_slice %80 {offsets = [0, 0], sizes = [8, 128], strides = [1, 1]} : vector<8x512xf32> to vector<8x128xf32>
    %82 = arith.negf %81 : vector<8x128xf32>
    %83 = math.exp %82 : vector<8x128xf32>
    %cst_30 = arith.constant 1.000000e+00 : f32
    %84 = vector.broadcast %cst_30 : f32 to vector<8x128xf32>
    %85 = arith.addf %84, %83 : vector<8x128xf32>
    %86 = arith.divf %84, %85 : vector<8x128xf32>
    %87 = vector.extract_strided_slice %80 {offsets = [0, 128], sizes = [8, 128], strides = [1, 1]} : vector<8x512xf32> to vector<8x128xf32>
    %88 = arith.negf %87 : vector<8x128xf32>
    %89 = math.exp %88 : vector<8x128xf32>
    %cst_31 = arith.constant 1.000000e+00 : f32
    %90 = vector.broadcast %cst_31 : f32 to vector<8x128xf32>
    %91 = arith.addf %90, %89 : vector<8x128xf32>
    %92 = arith.divf %90, %91 : vector<8x128xf32>
    %93 = vector.extract_strided_slice %80 {offsets = [0, 256], sizes = [8, 128], strides = [1, 1]} : vector<8x512xf32> to vector<8x128xf32>
    %94 = math.tanh %93 : vector<8x128xf32>
    %95 = vector.extract_strided_slice %80 {offsets = [0, 384], sizes = [8, 128], strides = [1, 1]} : vector<8x512xf32> to vector<8x128xf32>
    %96 = arith.negf %95 : vector<8x128xf32>
    %97 = math.exp %96 : vector<8x128xf32>
    %cst_32 = arith.constant 1.000000e+00 : f32
    %98 = vector.broadcast %cst_32 : f32 to vector<8x128xf32>
    %99 = arith.addf %98, %97 : vector<8x128xf32>
    %100 = arith.divf %98, %99 : vector<8x128xf32>
    %101 = arith.mulf %92, %71 : vector<8x128xf32>
    %102 = arith.mulf %86, %94 : vector<8x128xf32>
    %103 = arith.addf %101, %102 : vector<8x128xf32>
    %104 = math.tanh %103 : vector<8x128xf32>
    %105 = arith.mulf %100, %104 : vector<8x128xf32>
    %c3_i32 = arith.constant 3 : i32
    %c8_i32_33 = arith.constant 8 : i32
    %106 = arith.muli %c3_i32, %c8_i32_33 : i32
    %107 = tpu.assume_multiple %106, 8 : i32
    %108 = arith.index_cast %107 : i32 to index
    %c0_34 = arith.constant 0 : index
    %109 = vector.load %arg8[%108, %c0_34] : memref<64x512xf32, #tpu.memory_space<vmem>>, vector<8x512xf32>
    %c0_35 = arith.constant 0 : index
    %c0_36 = arith.constant 0 : index
    %110 = vector.load %arg3[%c0_35, %c0_36] : memref<128x512xf32, #tpu.memory_space<vmem>>, vector<128x512xf32>
    %cst_37 = arith.constant dense<0.000000e+00> : vector<8x512xf32>
    %111 = tpu.matmul %105, %110, %cst_37 {dimension_numbers = #tpu.dot_dimension_numbers<[1], [0], [0], [1], [0, 0, 1, 1], [], []>} : vector<8x128xf32>, vector<128x512xf32>, vector<8x512xf32> -> vector<8x512xf32>
    %112 = arith.addf %109, %111 : vector<8x512xf32>
    %113 = vector.extract_strided_slice %112 {offsets = [0, 0], sizes = [8, 128], strides = [1, 1]} : vector<8x512xf32> to vector<8x128xf32>
    %114 = arith.negf %113 : vector<8x128xf32>
    %115 = math.exp %114 : vector<8x128xf32>
    %cst_38 = arith.constant 1.000000e+00 : f32
    %116 = vector.broadcast %cst_38 : f32 to vector<8x128xf32>
    %117 = arith.addf %116, %115 : vector<8x128xf32>
    %118 = arith.divf %116, %117 : vector<8x128xf32>
    %119 = vector.extract_strided_slice %112 {offsets = [0, 128], sizes = [8, 128], strides = [1, 1]} : vector<8x512xf32> to vector<8x128xf32>
    %120 = arith.negf %119 : vector<8x128xf32>
    %121 = math.exp %120 : vector<8x128xf32>
    %cst_39 = arith.constant 1.000000e+00 : f32
    %122 = vector.broadcast %cst_39 : f32 to vector<8x128xf32>
    %123 = arith.addf %122, %121 : vector<8x128xf32>
    %124 = arith.divf %122, %123 : vector<8x128xf32>
    %125 = vector.extract_strided_slice %112 {offsets = [0, 256], sizes = [8, 128], strides = [1, 1]} : vector<8x512xf32> to vector<8x128xf32>
    %126 = math.tanh %125 : vector<8x128xf32>
    %127 = vector.extract_strided_slice %112 {offsets = [0, 384], sizes = [8, 128], strides = [1, 1]} : vector<8x512xf32> to vector<8x128xf32>
    %128 = arith.negf %127 : vector<8x128xf32>
    %129 = math.exp %128 : vector<8x128xf32>
    %cst_40 = arith.constant 1.000000e+00 : f32
    %130 = vector.broadcast %cst_40 : f32 to vector<8x128xf32>
    %131 = arith.addf %130, %129 : vector<8x128xf32>
    %132 = arith.divf %130, %131 : vector<8x128xf32>
    %133 = arith.mulf %124, %103 : vector<8x128xf32>
    %134 = arith.mulf %118, %126 : vector<8x128xf32>
    %135 = arith.addf %133, %134 : vector<8x128xf32>
    %136 = math.tanh %135 : vector<8x128xf32>
    %137 = arith.mulf %132, %136 : vector<8x128xf32>
    %c4_i32 = arith.constant 4 : i32
    %c8_i32_41 = arith.constant 8 : i32
    %138 = arith.muli %c4_i32, %c8_i32_41 : i32
    %139 = tpu.assume_multiple %138, 8 : i32
    %140 = arith.index_cast %139 : i32 to index
    %c0_42 = arith.constant 0 : index
    %141 = vector.load %arg8[%140, %c0_42] : memref<64x512xf32, #tpu.memory_space<vmem>>, vector<8x512xf32>
    %c0_43 = arith.constant 0 : index
    %c0_44 = arith.constant 0 : index
    %142 = vector.load %arg3[%c0_43, %c0_44] : memref<128x512xf32, #tpu.memory_space<vmem>>, vector<128x512xf32>
    %cst_45 = arith.constant dense<0.000000e+00> : vector<8x512xf32>
    %143 = tpu.matmul %137, %142, %cst_45 {dimension_numbers = #tpu.dot_dimension_numbers<[1], [0], [0], [1], [0, 0, 1, 1], [], []>} : vector<8x128xf32>, vector<128x512xf32>, vector<8x512xf32> -> vector<8x512xf32>
    %144 = arith.addf %141, %143 : vector<8x512xf32>
    %145 = vector.extract_strided_slice %144 {offsets = [0, 0], sizes = [8, 128], strides = [1, 1]} : vector<8x512xf32> to vector<8x128xf32>
    %146 = arith.negf %145 : vector<8x128xf32>
    %147 = math.exp %146 : vector<8x128xf32>
    %cst_46 = arith.constant 1.000000e+00 : f32
    %148 = vector.broadcast %cst_46 : f32 to vector<8x128xf32>
    %149 = arith.addf %148, %147 : vector<8x128xf32>
    %150 = arith.divf %148, %149 : vector<8x128xf32>
    %151 = vector.extract_strided_slice %144 {offsets = [0, 128], sizes = [8, 128], strides = [1, 1]} : vector<8x512xf32> to vector<8x128xf32>
    %152 = arith.negf %151 : vector<8x128xf32>
    %153 = math.exp %152 : vector<8x128xf32>
    %cst_47 = arith.constant 1.000000e+00 : f32
    %154 = vector.broadcast %cst_47 : f32 to vector<8x128xf32>
    %155 = arith.addf %154, %153 : vector<8x128xf32>
    %156 = arith.divf %154, %155 : vector<8x128xf32>
    %157 = vector.extract_strided_slice %144 {offsets = [0, 256], sizes = [8, 128], strides = [1, 1]} : vector<8x512xf32> to vector<8x128xf32>
    %158 = math.tanh %157 : vector<8x128xf32>
    %159 = vector.extract_strided_slice %144 {offsets = [0, 384], sizes = [8, 128], strides = [1, 1]} : vector<8x512xf32> to vector<8x128xf32>
    %160 = arith.negf %159 : vector<8x128xf32>
    %161 = math.exp %160 : vector<8x128xf32>
    %cst_48 = arith.constant 1.000000e+00 : f32
    %162 = vector.broadcast %cst_48 : f32 to vector<8x128xf32>
    %163 = arith.addf %162, %161 : vector<8x128xf32>
    %164 = arith.divf %162, %163 : vector<8x128xf32>
    %165 = arith.mulf %156, %135 : vector<8x128xf32>
    %166 = arith.mulf %150, %158 : vector<8x128xf32>
    %167 = arith.addf %165, %166 : vector<8x128xf32>
    %168 = math.tanh %167 : vector<8x128xf32>
    %169 = arith.mulf %164, %168 : vector<8x128xf32>
    %c5_i32 = arith.constant 5 : i32
    %c8_i32_49 = arith.constant 8 : i32
    %170 = arith.muli %c5_i32, %c8_i32_49 : i32
    %171 = tpu.assume_multiple %170, 8 : i32
    %172 = arith.index_cast %171 : i32 to index
    %c0_50 = arith.constant 0 : index
    %173 = vector.load %arg8[%172, %c0_50] : memref<64x512xf32, #tpu.memory_space<vmem>>, vector<8x512xf32>
    %c0_51 = arith.constant 0 : index
    %c0_52 = arith.constant 0 : index
    %174 = vector.load %arg3[%c0_51, %c0_52] : memref<128x512xf32, #tpu.memory_space<vmem>>, vector<128x512xf32>
    %cst_53 = arith.constant dense<0.000000e+00> : vector<8x512xf32>
    %175 = tpu.matmul %169, %174, %cst_53 {dimension_numbers = #tpu.dot_dimension_numbers<[1], [0], [0], [1], [0, 0, 1, 1], [], []>} : vector<8x128xf32>, vector<128x512xf32>, vector<8x512xf32> -> vector<8x512xf32>
    %176 = arith.addf %173, %175 : vector<8x512xf32>
    %177 = vector.extract_strided_slice %176 {offsets = [0, 0], sizes = [8, 128], strides = [1, 1]} : vector<8x512xf32> to vector<8x128xf32>
    %178 = arith.negf %177 : vector<8x128xf32>
    %179 = math.exp %178 : vector<8x128xf32>
    %cst_54 = arith.constant 1.000000e+00 : f32
    %180 = vector.broadcast %cst_54 : f32 to vector<8x128xf32>
    %181 = arith.addf %180, %179 : vector<8x128xf32>
    %182 = arith.divf %180, %181 : vector<8x128xf32>
    %183 = vector.extract_strided_slice %176 {offsets = [0, 128], sizes = [8, 128], strides = [1, 1]} : vector<8x512xf32> to vector<8x128xf32>
    %184 = arith.negf %183 : vector<8x128xf32>
    %185 = math.exp %184 : vector<8x128xf32>
    %cst_55 = arith.constant 1.000000e+00 : f32
    %186 = vector.broadcast %cst_55 : f32 to vector<8x128xf32>
    %187 = arith.addf %186, %185 : vector<8x128xf32>
    %188 = arith.divf %186, %187 : vector<8x128xf32>
    %189 = vector.extract_strided_slice %176 {offsets = [0, 256], sizes = [8, 128], strides = [1, 1]} : vector<8x512xf32> to vector<8x128xf32>
    %190 = math.tanh %189 : vector<8x128xf32>
    %191 = vector.extract_strided_slice %176 {offsets = [0, 384], sizes = [8, 128], strides = [1, 1]} : vector<8x512xf32> to vector<8x128xf32>
    %192 = arith.negf %191 : vector<8x128xf32>
    %193 = math.exp %192 : vector<8x128xf32>
    %cst_56 = arith.constant 1.000000e+00 : f32
    %194 = vector.broadcast %cst_56 : f32 to vector<8x128xf32>
    %195 = arith.addf %194, %193 : vector<8x128xf32>
    %196 = arith.divf %194, %195 : vector<8x128xf32>
    %197 = arith.mulf %188, %167 : vector<8x128xf32>
    %198 = arith.mulf %182, %190 : vector<8x128xf32>
    %199 = arith.addf %197, %198 : vector<8x128xf32>
    %200 = math.tanh %199 : vector<8x128xf32>
    %201 = arith.mulf %196, %200 : vector<8x128xf32>
    %c6_i32 = arith.constant 6 : i32
    %c8_i32_57 = arith.constant 8 : i32
    %202 = arith.muli %c6_i32, %c8_i32_57 : i32
    %203 = tpu.assume_multiple %202, 8 : i32
    %204 = arith.index_cast %203 : i32 to index
    %c0_58 = arith.constant 0 : index
    %205 = vector.load %arg8[%204, %c0_58] : memref<64x512xf32, #tpu.memory_space<vmem>>, vector<8x512xf32>
    %c0_59 = arith.constant 0 : index
    %c0_60 = arith.constant 0 : index
    %206 = vector.load %arg3[%c0_59, %c0_60] : memref<128x512xf32, #tpu.memory_space<vmem>>, vector<128x512xf32>
    %cst_61 = arith.constant dense<0.000000e+00> : vector<8x512xf32>
    %207 = tpu.matmul %201, %206, %cst_61 {dimension_numbers = #tpu.dot_dimension_numbers<[1], [0], [0], [1], [0, 0, 1, 1], [], []>} : vector<8x128xf32>, vector<128x512xf32>, vector<8x512xf32> -> vector<8x512xf32>
    %208 = arith.addf %205, %207 : vector<8x512xf32>
    %209 = vector.extract_strided_slice %208 {offsets = [0, 0], sizes = [8, 128], strides = [1, 1]} : vector<8x512xf32> to vector<8x128xf32>
    %210 = arith.negf %209 : vector<8x128xf32>
    %211 = math.exp %210 : vector<8x128xf32>
    %cst_62 = arith.constant 1.000000e+00 : f32
    %212 = vector.broadcast %cst_62 : f32 to vector<8x128xf32>
    %213 = arith.addf %212, %211 : vector<8x128xf32>
    %214 = arith.divf %212, %213 : vector<8x128xf32>
    %215 = vector.extract_strided_slice %208 {offsets = [0, 128], sizes = [8, 128], strides = [1, 1]} : vector<8x512xf32> to vector<8x128xf32>
    %216 = arith.negf %215 : vector<8x128xf32>
    %217 = math.exp %216 : vector<8x128xf32>
    %cst_63 = arith.constant 1.000000e+00 : f32
    %218 = vector.broadcast %cst_63 : f32 to vector<8x128xf32>
    %219 = arith.addf %218, %217 : vector<8x128xf32>
    %220 = arith.divf %218, %219 : vector<8x128xf32>
    %221 = vector.extract_strided_slice %208 {offsets = [0, 256], sizes = [8, 128], strides = [1, 1]} : vector<8x512xf32> to vector<8x128xf32>
    %222 = math.tanh %221 : vector<8x128xf32>
    %223 = vector.extract_strided_slice %208 {offsets = [0, 384], sizes = [8, 128], strides = [1, 1]} : vector<8x512xf32> to vector<8x128xf32>
    %224 = arith.negf %223 : vector<8x128xf32>
    %225 = math.exp %224 : vector<8x128xf32>
    %cst_64 = arith.constant 1.000000e+00 : f32
    %226 = vector.broadcast %cst_64 : f32 to vector<8x128xf32>
    %227 = arith.addf %226, %225 : vector<8x128xf32>
    %228 = arith.divf %226, %227 : vector<8x128xf32>
    %229 = arith.mulf %220, %199 : vector<8x128xf32>
    %230 = arith.mulf %214, %222 : vector<8x128xf32>
    %231 = arith.addf %229, %230 : vector<8x128xf32>
    %232 = math.tanh %231 : vector<8x128xf32>
    %233 = arith.mulf %228, %232 : vector<8x128xf32>
    %c7_i32 = arith.constant 7 : i32
    %c8_i32_65 = arith.constant 8 : i32
    %234 = arith.muli %c7_i32, %c8_i32_65 : i32
    %235 = tpu.assume_multiple %234, 8 : i32
    %236 = arith.index_cast %235 : i32 to index
    %c0_66 = arith.constant 0 : index
    %237 = vector.load %arg8[%236, %c0_66] : memref<64x512xf32, #tpu.memory_space<vmem>>, vector<8x512xf32>
    %c0_67 = arith.constant 0 : index
    %c0_68 = arith.constant 0 : index
    %238 = vector.load %arg3[%c0_67, %c0_68] : memref<128x512xf32, #tpu.memory_space<vmem>>, vector<128x512xf32>
    %cst_69 = arith.constant dense<0.000000e+00> : vector<8x512xf32>
    %239 = tpu.matmul %233, %238, %cst_69 {dimension_numbers = #tpu.dot_dimension_numbers<[1], [0], [0], [1], [0, 0, 1, 1], [], []>} : vector<8x128xf32>, vector<128x512xf32>, vector<8x512xf32> -> vector<8x512xf32>
    %240 = arith.addf %237, %239 : vector<8x512xf32>
    %241 = vector.extract_strided_slice %240 {offsets = [0, 0], sizes = [8, 128], strides = [1, 1]} : vector<8x512xf32> to vector<8x128xf32>
    %242 = arith.negf %241 : vector<8x128xf32>
    %243 = math.exp %242 : vector<8x128xf32>
    %cst_70 = arith.constant 1.000000e+00 : f32
    %244 = vector.broadcast %cst_70 : f32 to vector<8x128xf32>
    %245 = arith.addf %244, %243 : vector<8x128xf32>
    %246 = arith.divf %244, %245 : vector<8x128xf32>
    %247 = vector.extract_strided_slice %240 {offsets = [0, 128], sizes = [8, 128], strides = [1, 1]} : vector<8x512xf32> to vector<8x128xf32>
    %248 = arith.negf %247 : vector<8x128xf32>
    %249 = math.exp %248 : vector<8x128xf32>
    %cst_71 = arith.constant 1.000000e+00 : f32
    %250 = vector.broadcast %cst_71 : f32 to vector<8x128xf32>
    %251 = arith.addf %250, %249 : vector<8x128xf32>
    %252 = arith.divf %250, %251 : vector<8x128xf32>
    %253 = vector.extract_strided_slice %240 {offsets = [0, 256], sizes = [8, 128], strides = [1, 1]} : vector<8x512xf32> to vector<8x128xf32>
    %254 = math.tanh %253 : vector<8x128xf32>
    %255 = vector.extract_strided_slice %240 {offsets = [0, 384], sizes = [8, 128], strides = [1, 1]} : vector<8x512xf32> to vector<8x128xf32>
    %256 = arith.negf %255 : vector<8x128xf32>
    %257 = math.exp %256 : vector<8x128xf32>
    %cst_72 = arith.constant 1.000000e+00 : f32
    %258 = vector.broadcast %cst_72 : f32 to vector<8x128xf32>
    %259 = arith.addf %258, %257 : vector<8x128xf32>
    %260 = arith.divf %258, %259 : vector<8x128xf32>
    %261 = arith.mulf %252, %231 : vector<8x128xf32>
    %262 = arith.mulf %246, %254 : vector<8x128xf32>
    %263 = arith.addf %261, %262 : vector<8x128xf32>
    %264 = math.tanh %263 : vector<8x128xf32>
    %265 = arith.mulf %260, %264 : vector<8x128xf32>
    %c8_i32_73 = arith.constant 8 : i32
    %c0_74 = arith.constant 0 : index
    %c0_75 = arith.constant 0 : index
    %266 = vector.load %arg5[%c0_74, %c0_75] : memref<128x4xf32, #tpu.memory_space<vmem>>, vector<128x4xf32>
    %cst_76 = arith.constant dense<0.000000e+00> : vector<8x4xf32>
    %267 = tpu.matmul %265, %266, %cst_76 {dimension_numbers = #tpu.dot_dimension_numbers<[1], [0], [0], [1], [0, 0, 1, 1], [], []>} : vector<8x128xf32>, vector<128x4xf32>, vector<8x4xf32> -> vector<8x4xf32>
    %c0_77 = arith.constant 0 : index
    %c0_78 = arith.constant 0 : index
    %268 = vector.load %arg6[%c0_77, %c0_78] : memref<1x4xf32, #tpu.memory_space<vmem>>, vector<1x4xf32>
    %269 = vector.broadcast %268 : vector<1x4xf32> to vector<8x4xf32>
    %270 = arith.addf %267, %269 : vector<8x4xf32>
    %c0_79 = arith.constant 0 : index
    %c0_80 = arith.constant 0 : index
    %c0_81 = arith.constant 0 : index
    %271 = vector.load %arg7[%c0_79, %c0_80, %c0_81] : memref<1x8x4xf32, #tpu.memory_space<vmem>>, vector<1x8x4xf32>
    %272 = vector.shape_cast %271 : vector<1x8x4xf32> to vector<8x4xf32>
    %273 = vector.shape_cast %270 : vector<8x4xf32> to vector<1x8x4xf32>
    tpu.vector_store %arg7[%c0_79, %c0_80, %c0_81], %273 {strides = array<i32>} : memref<1x8x4xf32, #tpu.memory_space<vmem>>, vector<1x8x4xf32>,
    return
  }
  func.func @transform_0(%arg0: i32) -> (i32, i32, i32) {
    %c0_i32 = arith.constant 0 : i32
    %c0_i32_0 = arith.constant 0 : i32
    %c0_i32_1 = arith.constant 0 : i32
    return %arg0, %c0_i32, %c0_i32_0 : i32, i32, i32
  }
  func.func @transform_1(%arg0: i32) -> (i32, i32) {
    %c0_i32 = arith.constant 0 : i32
    %c0_i32_0 = arith.constant 0 : i32
    %c0_i32_1 = arith.constant 0 : i32
    return %c0_i32, %c0_i32_0 : i32, i32
  }
  func.func @transform_2(%arg0: i32) -> (i32, i32) {
    %c0_i32 = arith.constant 0 : i32
    %c0_i32_0 = arith.constant 0 : i32
    %c0_i32_1 = arith.constant 0 : i32
    return %c0_i32, %c0_i32_0 : i32, i32
  }
  func.func @transform_3(%arg0: i32) -> (i32, i32) {
    %c0_i32 = arith.constant 0 : i32
    %c0_i32_0 = arith.constant 0 : i32
    %c0_i32_1 = arith.constant 0 : i32
    return %c0_i32, %c0_i32_0 : i32, i32
  }
  func.func @transform_4(%arg0: i32) -> (i32, i32) {
    %c0_i32 = arith.constant 0 : i32
    %c0_i32_0 = arith.constant 0 : i32
    %c0_i32_1 = arith.constant 0 : i32
    return %c0_i32, %c0_i32_0 : i32, i32
  }
  func.func @transform_5(%arg0: i32) -> (i32, i32) {
    %c0_i32 = arith.constant 0 : i32
    %c0_i32_0 = arith.constant 0 : i32
    %c0_i32_1 = arith.constant 0 : i32
    return %c0_i32, %c0_i32_0 : i32, i32
  }
  func.func @transform_6(%arg0: i32) -> (i32, i32, i32) {
    %c0_i32 = arith.constant 0 : i32
    %c0_i32_0 = arith.constant 0 : i32
    %c0_i32_1 = arith.constant 0 : i32
    return %arg0, %c0_i32, %c0_i32_0 : i32, i32, i32
  }
}

</mosaic_0001>

<llo_original>
// kernel: tpu_custom_call.1
$region0: #{tpu_custom_call.1}
  #allocation0 [shape = 'u32[]', space=smem, size = 0x4, offset = 0x4, fixed_abs, tag = 'smem constant byte address 0x4 - core index']
  #allocation1 [shape = 'u32[144,128]{1,0:T(1,128)}', space=vmem, size = 0x12000, scoped, tag = 'internal scratch']
  #allocation2 [shape = 'f32[64,512]{1,0:T(8,128)}', space=vmem, size = 0x20000, scoped, tag = 'scratch operand']
  %s0 = inlined_call_operand.vmem [shape: f32[1,64,16], index: 0, kind: input, shape index: {}]
  %s1 = inlined_call_operand.vmem [shape: f32[16,512], index: 1, kind: input, shape index: {}]
  %s2 = inlined_call_operand.hbm [shape: f32[128,512], index: 2, kind: input, shape index: {}]
  %s3 = inlined_call_operand.vmem [shape: f32[1,512], index: 3, kind: input, shape index: {}]
  %s4 = inlined_call_operand.vmem [shape: f32[128,4], index: 4, kind: input, shape index: {}]
  %s5 = inlined_call_operand.vmem [shape: f32[1,4], index: 5, kind: input, shape index: {}]
  %s6 = inlined_call_operand.vmem [shape: f32[1,8,4], index: 6, kind: output, shape index: {}]
  %s7 = sld [smem:[#allocation0]]
  $region38: #{tpu_custom_call.1} parent=0
    _
  %s9 = ssub.s32 1, %s7
  %s10 = scalar_select 0, %s9, %s7
  $region1: #{tpu_custom_call.1} parent=0
    #allocation3 [shape = 'u8[262144]{0}', space=vmem, size = 0x40000, scoped, tag = 'input window, operand 2, single buffered']
    #allocation4 [shape = 's32[1]{0}', space=sflag, size = 0x4, scoped, tag = 'scoped memory for tpu_custom_call.1']
    %11 = vsyncpa [#allocation4], 0
    // Predicated region
    $region2: #{tpu_custom_call.1} parent=1 // pred_check
      _
    $region3: #{tpu_custom_call.1} parent=1 // pred_check_branch
      %13 = sbr.rel (0) target = $region5
    $region4: #{tpu_custom_call.1} parent=1 // pred_region
      _
    $region5: #{tpu_custom_call.1} parent=1 // pred_fallthru
      _
    // Predicated region
    $region6: #{tpu_custom_call.1} parent=1 // pred_check
      _
    $region7: #{tpu_custom_call.1} parent=1 // pred_check_branch
      %15 = sbr.rel (0) target = $region9
    $region8: #{tpu_custom_call.1} parent=1 // pred_region
      _
    $region9: #{tpu_custom_call.1} parent=1 // pred_fallthru
      _
    // Predicated region
    $region10: #{tpu_custom_call.1} parent=1 // pred_check
      _
    $region11: #{tpu_custom_call.1} parent=1 // pred_check_branch
      %17 = sbr.rel (0) target = $region13
    $region12: #{tpu_custom_call.1} parent=1 // pred_region
      %s19 = ssub.s32 8192, 8192
      %20 = vsyncadd [#allocation4], %s19
      %s21 = sshll.u32 [#allocation3], 4
      %s22 = int_to_ptr.vmem [resolvable:$true] %s21
      %27 = dma.hbm_to_vmem [thread:$0]  %s2, 8192, %s22, [#allocation4], 512, 512, 32
    $region13: #{tpu_custom_call.1} parent=1 // pred_fallthru
      _
    // Predicated region
    $region14: #{tpu_custom_call.1} parent=1 // pred_check
      _
    $region15: #{tpu_custom_call.1} parent=1 // pred_check_branch
      %29 = sbr.rel (0) target = $region17
    $region16: #{tpu_custom_call.1} parent=1 // pred_region
      _
    $region17: #{tpu_custom_call.1} parent=1 // pred_fallthru
      _
    // Predicated region
    $region18: #{tpu_custom_call.1} parent=1 // pred_check
      _
    $region19: #{tpu_custom_call.1} parent=1 // pred_check_branch
      %31 = sbr.rel (0) target = $region21
    $region20: #{tpu_custom_call.1} parent=1 // pred_region
      _
    $region21: #{tpu_custom_call.1} parent=1 // pred_fallthru
      _
    // Predicated region
    $region22: #{tpu_custom_call.1} parent=1 // pred_check
      _
    $region23: #{tpu_custom_call.1} parent=1 // pred_check_branch
      %33 = sbr.rel (0) target = $region25
    $region24: #{tpu_custom_call.1} parent=1 // pred_region
      _
    $region25: #{tpu_custom_call.1} parent=1 // pred_fallthru
      _
    // Predicated region
    $region26: #{tpu_custom_call.1} parent=1 // pred_check
      _
    $region27: #{tpu_custom_call.1} parent=1 // pred_check_branch
      %35 = sbr.rel (0) target = $region29
    $region28: #{tpu_custom_call.1} parent=1 // pred_region
      %36 = dma.done [#allocation4], 8192
    $region29: #{tpu_custom_call.1} parent=1 // pred_fallthru
      _
    %v37 = vld [vmem:[%s0] sm:$0xff]
    %v38 = vld [vmem:[%s0 + $0x8] sm:$0xff]
    %v39 = vld [vmem:[%s0 + $0x10] sm:$0xff]
    %v40 = vld [vmem:[%s0 + $0x18] sm:$0xff]
    %v41 = vld [vmem:[%s0 + $0x20] sm:$0xff]
    %v42 = vld [vmem:[%s0 + $0x28] sm:$0xff]
    %v43 = vld [vmem:[%s0 + $0x30] sm:$0xff]
    %v44 = vld [vmem:[%s0 + $0x38] sm:$0xff]
    %v45 = vld [vmem:[%s1] sm:$0xff]
    %v46 = vld [vmem:[%s1 + $0x8] sm:$0xff]
    %v47 = vld [vmem:[%s1 + $0x10] sm:$0xff]
    %v48 = vld [vmem:[%s1 + $0x18] sm:$0xff]
    %v49 = vld [vmem:[%s1 + $0x20] sm:$0xff]
    %v50 = vld [vmem:[%s1 + $0x28] sm:$0xff]
    %v51 = vld [vmem:[%s1 + $0x30] sm:$0xff]
    %v52 = vld [vmem:[%s1 + $0x38] sm:$0xff]
    %v53 = vld [vmem:[%s3] sm:$0xf]
    %v55 = vlaneseq
    %v56 = vshrl.u32 %v55, 7
    %v57 = vsub.s32 0, %v56
    %v58 = vrot.slane %v53, %v57
    %v59 = vlaneseq
    %v60 = vshrl.u32 %v59, 7
    %v61 = vsub.s32 1, %v60
    %v62 = vrot.slane %v53, %v61
    %v63 = vlaneseq
    %v64 = vshrl.u32 %v63, 7
    %v65 = vsub.s32 2, %v64
    %v66 = vrot.slane %v53, %v65
    %v67 = vlaneseq
    %v68 = vshrl.u32 %v67, 7
    %v69 = vsub.s32 3, %v68
    %v70 = vrot.slane %v53, %v69
    %vm75 = vcmask 130048
    %v77 = vsel %vm75, %v37, 0
    %v80 = vsel %vm75, %v38, 0
    %v83 = vsel %vm75, %v39, 0
    %v86 = vsel %vm75, %v40, 0
    %v89 = vsel %vm75, %v41, 0
    %v92 = vsel %vm75, %v42, 0
    %v95 = vsel %vm75, %v43, 0
    %v98 = vsel %vm75, %v44, 0
    %100 = vmatprep.subr.mxu0 0.0
    %101 = vmatpush1.msra.mxu0 0.0
    %102 = vmatprep.subr.mxu0 0.0
    %103 = vmatpush1.msra.mxu0 0.0
    %104 = vmatprep.subr.mxu0 0.0
    %105 = vmatpush1.msra.mxu0 0.0
    %106 = vmatprep.subr.mxu0 0.0
    %107 = vmatpush1.msra.mxu0 0.0
    %108 = vmatprep.subr.mxu0 0.0
    %109 = vmatpush1.msra.mxu0 0.0
    %110 = vmatprep.subr.mxu0 0.0
    %111 = vmatpush1.msra.mxu0 0.0
    %112 = vmatprep.subr.mxu0 0.0
    %113 = vmatpush1.msra.mxu0 0.0
    %114 = vmatprep.subr.mxu0 0.0
    %115 = vmatpush1.msra.mxu0 0.0
    %116 = vmatprep.subr.mxu0 0.0
    %117 = vmatpush1.msra.mxu0 0.0
    %118 = vmatprep.subr.mxu0 0.0
    %119 = vmatpush1.msra.mxu0 0.0
    %120 = vmatprep.subr.mxu0 0.0
    %121 = vmatpush1.msra.mxu0 0.0
    %122 = vmatprep.subr.mxu0 0.0
    %123 = vmatpush1.msra.mxu0 0.0
    %124 = vmatprep.subr.mxu0 0.0
    %125 = vmatpush1.msra.mxu0 0.0
    %126 = vmatprep.subr.mxu0 0.0
    %127 = vmatpush1.msra.mxu0 0.0
    %128 = vmatprep.subr.mxu0 %v50
    %129 = vmatpush1.msra.mxu0 %v49
    %130 = vmatprep.subr.mxu0 %v46
    %131 = vmatpush1.msra.mxu0 %v45
    %132 = vmatprep.subr.mxu0 0.0
    %133 = vmatpush2.msra.mxu0 0.0
    %134 = vmatprep.subr.mxu0 0.0
    %135 = vmatpush2.msra.mxu0 0.0
    %136 = vmatprep.subr.mxu0 0.0
    %137 = vmatpush2.msra.mxu0 0.0
    %138 = vmatprep.subr.mxu0 0.0
    %139 = vmatpush2.msra.mxu0 0.0
    %140 = vmatprep.subr.mxu0 0.0
    %141 = vmatpush2.msra.mxu0 0.0
    %142 = vmatprep.subr.mxu0 0.0
    %143 = vmatpush2.msra.mxu0 0.0
    %144 = vmatprep.subr.mxu0 0.0
    %145 = vmatpush2.msra.mxu0 0.0
    %146 = vmatprep.subr.mxu0 0.0
    %147 = vmatpush2.msra.mxu0 0.0
    %148 = vmatprep.subr.mxu0 0.0
    %149 = vmatpush2.msra.mxu0 0.0
    %150 = vmatprep.subr.mxu0 0.0
    %151 = vmatpush2.msra.mxu0 0.0
    %152 = vmatprep.subr.mxu0 0.0
    %153 = vmatpush2.msra.mxu0 0.0
    %154 = vmatprep.subr.mxu0 0.0
    %155 = vmatpush2.msra.mxu0 0.0
    %156 = vmatprep.subr.mxu0 0.0
    %157 = vmatpush2.msra.mxu0 0.0
    %158 = vmatprep.subr.mxu0 0.0
    %159 = vmatpush2.msra.mxu0 0.0
    %160 = vmatprep.subr.mxu0 0.0
    %161 = vmatpush2.msra.mxu0 0.0
    %162 = vmatprep.subr.mxu0 0.0
    %163 = vmatpush2.msra.mxu0 0.0
    %164 = vmatprep.mubr.f32.mxu0 0.0
    %165 = vmatmul.mubr.f32.gmra.mxu0 %v77
    %v166 = vpop.f32.mrf.mxu0
    %v167 = vadd.f32 %v58, %v166
    %v168 = vpop.f32.mrf.mxu0
    %v169 = vadd.f32 %v62, %v168
    %170 = vmatprep.mubr.f32.mxu0 0.0
    %171 = vmatmul.mubr.f32.gmra.mxu0 %v80
    %v172 = vpop.f32.mrf.mxu0
    %v173 = vadd.f32 %v58, %v172
    %v174 = vpop.f32.mrf.mxu0
    %v175 = vadd.f32 %v62, %v174
    %176 = vmatprep.mubr.f32.mxu0 0.0
    %177 = vmatmul.mubr.f32.gmra.mxu0 %v83
    %v178 = vpop.f32.mrf.mxu0
    %v179 = vadd.f32 %v58, %v178
    %v180 = vpop.f32.mrf.mxu0
    %v181 = vadd.f32 %v62, %v180
    %182 = vmatprep.mubr.f32.mxu0 0.0
    %183 = vmatmul.mubr.f32.gmra.mxu0 %v86
    %v184 = vpop.f32.mrf.mxu0
    %v185 = vadd.f32 %v58, %v184
    %v186 = vpop.f32.mrf.mxu0
    %v187 = vadd.f32 %v62, %v186
    %188 = vmatprep.mubr.f32.mxu0 0.0
    %189 = vmatmul.mubr.f32.gmra.mxu0 %v89
    %v190 = vpop.f32.mrf.mxu0
    %v191 = vadd.f32 %v58, %v190
    %v192 = vpop.f32.mrf.mxu0
    %v193 = vadd.f32 %v62, %v192
    %194 = vmatprep.mubr.f32.mxu0 0.0
    %195 = vmatmul.mubr.f32.gmra.mxu0 %v92
    %v196 = vpop.f32.mrf.mxu0
    %v197 = vadd.f32 %v58, %v196
    %v198 = vpop.f32.mrf.mxu0
    %v199 = vadd.f32 %v62, %v198
    %200 = vmatprep.mubr.f32.mxu0 0.0
    %201 = vmatmul.mubr.f32.gmra.mxu0 %v95
    %v202 = vpop.f32.mrf.mxu0
    %v203 = vadd.f32 %v58, %v202
    %v204 = vpop.f32.mrf.mxu0
    %v205 = vadd.f32 %v62, %v204
    %206 = vmatprep.mubr.f32.mxu0 0.0
    %207 = vmatmul.mubr.f32.gmra.mxu0 %v98
    %v208 = vpop.f32.mrf.mxu0
    %v209 = vadd.f32 %v58, %v208
    %v210 = vpop.f32.mrf.mxu0
    %v211 = vadd.f32 %v62, %v210
    %212 = vdwg.mxu0
    %213 = vmatprep.subr.mxu0 0.0
    %214 = vmatpush1.msra.mxu0 0.0
    %215 = vmatprep.subr.mxu0 0.0
    %216 = vmatpush1.msra.mxu0 0.0
    %217 = vmatprep.subr.mxu0 0.0
    %218 = vmatpush1.msra.mxu0 0.0
    %219 = vmatprep.subr.mxu0 0.0
    %220 = vmatpush1.msra.mxu0 0.0
    %221 = vmatprep.subr.mxu0 0.0
    %222 = vmatpush1.msra.mxu0 0.0
    %223 = vmatprep.subr.mxu0 0.0
    %224 = vmatpush1.msra.mxu0 0.0
    %225 = vmatprep.subr.mxu0 0.0
    %226 = vmatpush1.msra.mxu0 0.0
    %227 = vmatprep.subr.mxu0 0.0
    %228 = vmatpush1.msra.mxu0 0.0
    %229 = vmatprep.subr.mxu0 0.0
    %230 = vmatpush1.msra.mxu0 0.0
    %231 = vmatprep.subr.mxu0 0.0
    %232 = vmatpush1.msra.mxu0 0.0
    %233 = vmatprep.subr.mxu0 0.0
    %234 = vmatpush1.msra.mxu0 0.0
    %235 = vmatprep.subr.mxu0 0.0
    %236 = vmatpush1.msra.mxu0 0.0
    %237 = vmatprep.subr.mxu0 0.0
    %238 = vmatpush1.msra.mxu0 0.0
    %239 = vmatprep.subr.mxu0 0.0
    %240 = vmatpush1.msra.mxu0 0.0
    %241 = vmatprep.subr.mxu0 %v52
    %242 = vmatpush1.msra.mxu0 %v51
    %243 = vmatprep.subr.mxu0 %v48
    %244 = vmatpush1.msra.mxu0 %v47
    %245 = vmatprep.subr.mxu0 0.0
    %246 = vmatpush2.msra.mxu0 0.0
    %247 = vmatprep.subr.mxu0 0.0
    %248 = vmatpush2.msra.mxu0 0.0
    %249 = vmatprep.subr.mxu0 0.0
    %250 = vmatpush2.msra.mxu0 0.0
    %251 = vmatprep.subr.mxu0 0.0
    %252 = vmatpush2.msra.mxu0 0.0
    %253 = vmatprep.subr.mxu0 0.0
    %254 = vmatpush2.msra.mxu0 0.0
    %255 = vmatprep.subr.mxu0 0.0
    %256 = vmatpush2.msra.mxu0 0.0
    %257 = vmatprep.subr.mxu0 0.0
    %258 = vmatpush2.msra.mxu0 0.0
    %259 = vmatprep.subr.mxu0 0.0
    %260 = vmatpush2.msra.mxu0 0.0
    %261 = vmatprep.subr.mxu0 0.0
    %262 = vmatpush2.msra.mxu0 0.0
    %263 = vmatprep.subr.mxu0 0.0
    %264 = vmatpush2.msra.mxu0 0.0
    %265 = vmatprep.subr.mxu0 0.0
    %266 = vmatpush2.msra.mxu0 0.0
    %267 = vmatprep.subr.mxu0 0.0
    %268 = vmatpush2.msra.mxu0 0.0
    %269 = vmatprep.subr.mxu0 0.0
    %270 = vmatpush2.msra.mxu0 0.0
    %271 = vmatprep.subr.mxu0 0.0
    %272 = vmatpush2.msra.mxu0 0.0
    %273 = vmatprep.subr.mxu0 0.0
    %274 = vmatpush2.msra.mxu0 0.0
    %275 = vmatprep.subr.mxu0 0.0
    %276 = vmatpush2.msra.mxu0 0.0
    %277 = vmatprep.mubr.f32.mxu0 0.0
    %278 = vmatmul.mubr.f32.gmra.mxu0 %v77
    %v279 = vpop.f32.mrf.mxu0
    %v280 = vadd.f32 %v66, %v279
    %v281 = vpop.f32.mrf.mxu0
    %v282 = vadd.f32 %v70, %v281
    %283 = vmatprep.mubr.f32.mxu0 0.0
    %284 = vmatmul.mubr.f32.gmra.mxu0 %v80
    %v285 = vpop.f32.mrf.mxu0
    %v286 = vadd.f32 %v66, %v285
    %v287 = vpop.f32.mrf.mxu0
    %v288 = vadd.f32 %v70, %v287
    %289 = vmatprep.mubr.f32.mxu0 0.0
    %290 = vmatmul.mubr.f32.gmra.mxu0 %v83
    %v291 = vpop.f32.mrf.mxu0
    %v292 = vadd.f32 %v66, %v291
    %v293 = vpop.f32.mrf.mxu0
    %v294 = vadd.f32 %v70, %v293
    %295 = vmatprep.mubr.f32.mxu0 0.0
    %296 = vmatmul.mubr.f32.gmra.mxu0 %v86
    %v297 = vpop.f32.mrf.mxu0
    %v298 = vadd.f32 %v66, %v297
    %v299 = vpop.f32.mrf.mxu0
    %v300 = vadd.f32 %v70, %v299
    %301 = vmatprep.mubr.f32.mxu0 0.0
    %302 = vmatmul.mubr.f32.gmra.mxu0 %v89
    %v303 = vpop.f32.mrf.mxu0
    %v304 = vadd.f32 %v66, %v303
    %v305 = vpop.f32.mrf.mxu0
    %v306 = vadd.f32 %v70, %v305
    %307 = vmatprep.mubr.f32.mxu0 0.0
    %308 = vmatmul.mubr.f32.gmra.mxu0 %v92
    %v309 = vpop.f32.mrf.mxu0
    %v310 = vadd.f32 %v66, %v309
    %v311 = vpop.f32.mrf.mxu0
    %v312 = vadd.f32 %v70, %v311
    %313 = vmatprep.mubr.f32.mxu0 0.0
    %314 = vmatmul.mubr.f32.gmra.mxu0 %v95
    %v315 = vpop.f32.mrf.mxu0
    %v316 = vadd.f32 %v66, %v315
    %v317 = vpop.f32.mrf.mxu0
    %v318 = vadd.f32 %v70, %v317
    %319 = vmatprep.mubr.f32.mxu0 0.0
    %320 = vmatmul.mubr.f32.gmra.mxu0 %v98
    %v321 = vpop.f32.mrf.mxu0
    %v322 = vadd.f32 %v66, %v321
    %v323 = vpop.f32.mrf.mxu0
    %v324 = vadd.f32 %v70, %v323
    %325 = vdwg.mxu0
    %326 = vst [vmem:[#allocation2] sm:$0xff] %v167
    %327 = vst [vmem:[#allocation2 + $0x8] sm:$0xff] %v169
    %328 = vst [vmem:[#allocation2 + $0x10] sm:$0xff] %v280
    %329 = vst [vmem:[#allocation2 + $0x18] sm:$0xff] %v282
    %330 = vst [vmem:[#allocation2 + $0x20] sm:$0xff] %v173
    %331 = vst [vmem:[#allocation2 + $0x28] sm:$0xff] %v175
    %332 = vst [vmem:[#allocation2 + $0x30] sm:$0xff] %v286
    %333 = vst [vmem:[#allocation2 + $0x38] sm:$0xff] %v288
    %334 = vst [vmem:[#allocation2 + $0x40] sm:$0xff] %v179
    %335 = vst [vmem:[#allocation2 + $0x48] sm:$0xff] %v181
    %336 = vst [vmem:[#allocation2 + $0x50] sm:$0xff] %v292
    %337 = vst [vmem:[#allocation2 + $0x58] sm:$0xff] %v294
    %338 = vst [vmem:[#allocation2 + $0x60] sm:$0xff] %v185
    %339 = vst [vmem:[#allocation2 + $0x68] sm:$0xff] %v187
    %340 = vst [vmem:[#allocation2 + $0x70] sm:$0xff] %v298
    %341 = vst [vmem:[#allocation2 + $0x78] sm:$0xff] %v300
    %342 = vst [vmem:[#allocation2 + $0x80] sm:$0xff] %v191
    %343 = vst [vmem:[#allocation2 + $0x88] sm:$0xff] %v193
    %344 = vst [vmem:[#allocation2 + $0x90] sm:$0xff] %v304
    %345 = vst [vmem:[#allocation2 + $0x98] sm:$0xff] %v306
    %346 = vst [vmem:[#allocation2 + $0xa0] sm:$0xff] %v197
    %347 = vst [vmem:[#allocation2 + $0xa8] sm:$0xff] %v199
    %348 = vst [vmem:[#allocation2 + $0xb0] sm:$0xff] %v310
    %349 = vst [vmem:[#allocation2 + $0xb8] sm:$0xff] %v312
    %350 = vst [vmem:[#allocation2 + $0xc0] sm:$0xff] %v203
    %351 = vst [vmem:[#allocation2 + $0xc8] sm:$0xff] %v205
    %352 = vst [vmem:[#allocation2 + $0xd0] sm:$0xff] %v316
    %353 = vst [vmem:[#allocation2 + $0xd8] sm:$0xff] %v318
    %354 = vst [vmem:[#allocation2 + $0xe0] sm:$0xff] %v209
    %355 = vst [vmem:[#allocation2 + $0xe8] sm:$0xff] %v211
    %356 = vst [vmem:[#allocation2 + $0xf0] sm:$0xff] %v322
    %357 = vst [vmem:[#allocation2 + $0xf8] sm:$0xff] %v324
    %s358 = smul.u32 0, 4
    %s359 = smul.addr %s358, 8
    %s360 = scalar_lea.vmem [#allocation2], %s359
    %v361 = vld [vmem:[%s360] sm:$0xff]
    %v362 = vld [vmem:[%s360 + $0x8] sm:$0xff]
    %v363 = vld [vmem:[%s360 + $0x10] sm:$0xff]
    %v364 = vld [vmem:[%s360 + $0x18] sm:$0xff]
    %v365 = vld [vmem:[#allocation3] sm:$0xff]
    %v366 = vld [vmem:[#allocation3 + $0x8] sm:$0xff]
    %v367 = vld [vmem:[#allocation3 + $0x10] sm:$0xff]
    %v368 = vld [vmem:[#allocation3 + $0x18] sm:$0xff]
    %v369 = vld [vmem:[#allocation3 + $0x20] sm:$0xff]
    %v370 = vld [vmem:[#allocation3 + $0x28] sm:$0xff]
    %v371 = vld [vmem:[#allocation3 + $0x30] sm:$0xff]
    %v372 = vld [vmem:[#allocation3 + $0x38] sm:$0xff]
    %v373 = vld [vmem:[#allocation3 + $0x40] sm:$0xff]
    %v374 = vld [vmem:[#allocation3 + $0x48] sm:$0xff]
    %v375 = vld [vmem:[#allocation3 + $0x50] sm:$0xff]
    %v376 = vld [vmem:[#allocation3 + $0x58] sm:$0xff]
    %v377 = vld [vmem:[#allocation3 + $0x60] sm:$0xff]
    %v378 = vld [vmem:[#allocation3 + $0x68] sm:$0xff]
    %v379 = vld [vmem:[#allocation3 + $0x70] sm:$0xff]
    %v380 = vld [vmem:[#allocation3 + $0x78] sm:$0xff]
    %v381 = vld [vmem:[#allocation3 + $0x80] sm:$0xff]
    %v382 = vld [vmem:[#allocation3 + $0x88] sm:$0xff]
    %v383 = vld [vmem:[#allocation3 + $0x90] sm:$0xff]
    %v384 = vld [vmem:[#allocation3 + $0x98] sm:$0xff]
    %v385 = vld [vmem:[#allocation3 + $0xa0] sm:$0xff]
    %v386 = vld [vmem:[#allocation3 + $0xa8] sm:$0xff]
    %v387 = vld [vmem:[#allocation3 + $0xb0] sm:$0xff]
    %v388 = vld [vmem:[#allocation3 + $0xb8] sm:$0xff]
    %v389 = vld [vmem:[#allocation3 + $0xc0] sm:$0xff]
    %v390 = vld [vmem:[#allocation3 + $0xc8] sm:$0xff]
    %v391 = vld [vmem:[#allocation3 + $0xd0] sm:$0xff]
    %v392 = vld [vmem:[#allocation3 + $0xd8] sm:$0xff]
    %v393 = vld [vmem:[#allocation3 + $0xe0] sm:$0xff]
    %v394 = vld [vmem:[#allocation3 + $0xe8] sm:$0xff]
    %v395 = vld [vmem:[#allocation3 + $0xf0] sm:$0xff]
    %v396 = vld [vmem:[#allocation3 + $0xf8] sm:$0xff]
    %v397 = vld [vmem:[#allocation3 + $0x100] sm:$0xff]
    %v398 = vld [vmem:[#allocation3 + $0x108] sm:$0xff]
    %v399 = vld [vmem:[#allocation3 + $0x110] sm:$0xff]
    %v400 = vld [vmem:[#allocation3 + $0x118] sm:$0xff]
    %v401 = vld [vmem:[#allocation3 + $0x120] sm:$0xff]
    %v402 = vld [vmem:[#allocation3 + $0x128] sm:$0xff]
    %v403 = vld [vmem:[#allocation3 + $0x130] sm:$0xff]
    %v404 = vld [vmem:[#allocation3 + $0x138] sm:$0xff]
    %v405 = vld [vmem:[#allocation3 + $0x140] sm:$0xff]
    %v406 = vld [vmem:[#allocation3 + $0x148] sm:$0xff]
    %v407 = vld [vmem:[#allocation3 + $0x150] sm:$0xff]
    %v408 = vld [vmem:[#allocation3 + $0x158] sm:$0xff]
    %v409 = vld [vmem:[#allocation3 + $0x160] sm:$0xff]
    %v410 = vld [vmem:[#allocation3 + $0x168] sm:$0xff]
    %v411 = vld [vmem:[#allocation3 + $0x170] sm:$0xff]
    %v412 = vld [vmem:[#allocation3 + $0x178] sm:$0xff]
    %v413 = vld [vmem:[#allocation3 + $0x180] sm:$0xff]
    %v414 = vld [vmem:[#allocation3 + $0x188] sm:$0xff]
    %v415 = vld [vmem:[#allocation3 + $0x190] sm:$0xff]
    %v416 = vld [vmem:[#allocation3 + $0x198] sm:$0xff]
    %v417 = vld [vmem:[#allocation3 + $0x1a0] sm:$0xff]
    %v418 = vld [vmem:[#allocation3 + $0x1a8] sm:$0xff]
    %v419 = vld [vmem:[#allocation3 + $0x1b0] sm:$0xff]
    %v420 = vld [vmem:[#allocation3 + $0x1b8] sm:$0xff]
    %v421 = vld [vmem:[#allocation3 + $0x1c0] sm:$0xff]
    %v422 = vld [vmem:[#allocation3 + $0x1c8] sm:$0xff]
    %v423 = vld [vmem:[#allocation3 + $0x1d0] sm:$0xff]
    %v424 = vld [vmem:[#allocation3 + $0x1d8] sm:$0xff]
    %v425 = vld [vmem:[#allocation3 + $0x1e0] sm:$0xff]
    %v426 = vld [vmem:[#allocation3 + $0x1e8] sm:$0xff]
    %v427 = vld [vmem:[#allocation3 + $0x1f0] sm:$0xff]
    %v428 = vld [vmem:[#allocation3 + $0x1f8] sm:$0xff]
    %429 = vmatprep.subr.mxu0 %v426
    %430 = vmatpush1.msra.mxu0 %v425
    %431 = vmatprep.subr.mxu0 %v422
    %432 = vmatpush1.msra.mxu0 %v421
    %433 = vmatprep.subr.mxu0 %v418
    %434 = vmatpush1.msra.mxu0 %v417
    %435 = vmatprep.subr.mxu0 %v414
    %436 = vmatpush1.msra.mxu0 %v413
    %437 = vmatprep.subr.mxu0 %v410
    %438 = vmatpush1.msra.mxu0 %v409
    %439 = vmatprep.subr.mxu0 %v406
    %440 = vmatpush1.msra.mxu0 %v405
    %441 = vmatprep.subr.mxu0 %v402
    %442 = vmatpush1.msra.mxu0 %v401
    %443 = vmatprep.subr.mxu0 %v398
    %444 = vmatpush1.msra.mxu0 %v397
    %445 = vmatprep.subr.mxu0 %v394
    %446 = vmatpush1.msra.mxu0 %v393
    %447 = vmatprep.subr.mxu0 %v390
    %448 = vmatpush1.msra.mxu0 %v389
    %449 = vmatprep.subr.mxu0 %v386
    %450 = vmatpush1.msra.mxu0 %v385
    %451 = vmatprep.subr.mxu0 %v382
    %452 = vmatpush1.msra.mxu0 %v381
    %453 = vmatprep.subr.mxu0 %v378
    %454 = vmatpush1.msra.mxu0 %v377
    %455 = vmatprep.subr.mxu0 %v374
    %456 = vmatpush1.msra.mxu0 %v373
    %457 = vmatprep.subr.mxu0 %v370
    %458 = vmatpush1.msra.mxu0 %v369
    %459 = vmatprep.subr.mxu0 %v366
    %460 = vmatpush1.msra.mxu0 %v365
    %461 = vmatprep.subr.mxu0 0.0
    %462 = vmatpush2.msra.mxu0 0.0
    %463 = vmatprep.subr.mxu0 0.0
    %464 = vmatpush2.msra.mxu0 0.0
    %465 = vmatprep.subr.mxu0 0.0
    %466 = vmatpush2.msra.mxu0 0.0
    %467 = vmatprep.subr.mxu0 0.0
    %468 = vmatpush2.msra.mxu0 0.0
    %469 = vmatprep.subr.mxu0 0.0
    %470 = vmatpush2.msra.mxu0 0.0
    %471 = vmatprep.subr.mxu0 0.0
    %472 = vmatpush2.msra.mxu0 0.0
    %473 = vmatprep.subr.mxu0 0.0
    %474 = vmatpush2.msra.mxu0 0.0
    %475 = vmatprep.subr.mxu0 0.0
    %476 = vmatpush2.msra.mxu0 0.0
    %477 = vmatprep.subr.mxu0 0.0
    %478 = vmatpush2.msra.mxu0 0.0
    %479 = vmatprep.subr.mxu0 0.0
    %480 = vmatpush2.msra.mxu0 0.0
    %481 = vmatprep.subr.mxu0 0.0
    %482 = vmatpush2.msra.mxu0 0.0
    %483 = vmatprep.subr.mxu0 0.0
    %484 = vmatpush2.msra.mxu0 0.0
    %485 = vmatprep.subr.mxu0 0.0
    %486 = vmatpush2.msra.mxu0 0.0
    %487 = vmatprep.subr.mxu0 0.0
    %488 = vmatpush2.msra.mxu0 0.0
    %489 = vmatprep.subr.mxu0 0.0
    %490 = vmatpush2.msra.mxu0 0.0
    %491 = vmatprep.subr.mxu0 0.0
    %492 = vmatpush2.msra.mxu0 0.0
    %493 = vmatprep.mubr.f32.mxu0 0.0
    %494 = vmatmul.mubr.f32.gmra.mxu0 0.0
    %v495 = vpop.f32.mrf.mxu0
    %v496 = vadd.f32 0.0, %v495
    %v497 = vpop.f32.mrf.mxu0
    %v498 = vadd.f32 0.0, %v497
    %499 = vdwg.mxu0
    %500 = vmatprep.subr.mxu0 %v428
    %501 = vmatpush1.msra.mxu0 %v427
    %502 = vmatprep.subr.mxu0 %v424
    %503 = vmatpush1.msra.mxu0 %v423
    %504 = vmatprep.subr.mxu0 %v420
    %505 = vmatpush1.msra.mxu0 %v419
    %506 = vmatprep.subr.mxu0 %v416
    %507 = vmatpush1.msra.mxu0 %v415
    %508 = vmatprep.subr.mxu0 %v412
    %509 = vmatpush1.msra.mxu0 %v411
    %510 = vmatprep.subr.mxu0 %v408
    %511 = vmatpush1.msra.mxu0 %v407
    %512 = vmatprep.subr.mxu0 %v404
    %513 = vmatpush1.msra.mxu0 %v403
    %514 = vmatprep.subr.mxu0 %v400
    %515 = vmatpush1.msra.mxu0 %v399
    %516 = vmatprep.subr.mxu0 %v396
    %517 = vmatpush1.msra.mxu0 %v395
    %518 = vmatprep.subr.mxu0 %v392
    %519 = vmatpush1.msra.mxu0 %v391
    %520 = vmatprep.subr.mxu0 %v388
    %521 = vmatpush1.msra.mxu0 %v387
    %522 = vmatprep.subr.mxu0 %v384
    %523 = vmatpush1.msra.mxu0 %v383
    %524 = vmatprep.subr.mxu0 %v380
    %525 = vmatpush1.msra.mxu0 %v379
    %526 = vmatprep.subr.mxu0 %v376
    %527 = vmatpush1.msra.mxu0 %v375
    %528 = vmatprep.subr.mxu0 %v372
    %529 = vmatpush1.msra.mxu0 %v371
    %530 = vmatprep.subr.mxu0 %v368
    %531 = vmatpush1.msra.mxu0 %v367
    %532 = vmatprep.subr.mxu0 0.0
    %533 = vmatpush2.msra.mxu0 0.0
    %534 = vmatprep.subr.mxu0 0.0
    %535 = vmatpush2.msra.mxu0 0.0
    %536 = vmatprep.subr.mxu0 0.0
    %537 = vmatpush2.msra.mxu0 0.0
    %538 = vmatprep.subr.mxu0 0.0
    %539 = vmatpush2.msra.mxu0 0.0
    %540 = vmatprep.subr.mxu0 0.0
    %541 = vmatpush2.msra.mxu0 0.0
    %542 = vmatprep.subr.mxu0 0.0
    %543 = vmatpush2.msra.mxu0 0.0
    %544 = vmatprep.subr.mxu0 0.0
    %545 = vmatpush2.msra.mxu0 0.0
    %546 = vmatprep.subr.mxu0 0.0
    %547 = vmatpush2.msra.mxu0 0.0
    %548 = vmatprep.subr.mxu0 0.0
    %549 = vmatpush2.msra.mxu0 0.0
    %550 = vmatprep.subr.mxu0 0.0
    %551 = vmatpush2.msra.mxu0 0.0
    %552 = vmatprep.subr.mxu0 0.0
    %553 = vmatpush2.msra.mxu0 0.0
    %554 = vmatprep.subr.mxu0 0.0
    %555 = vmatpush2.msra.mxu0 0.0
    %556 = vmatprep.subr.mxu0 0.0
    %557 = vmatpush2.msra.mxu0 0.0
    %558 = vmatprep.subr.mxu0 0.0
    %559 = vmatpush2.msra.mxu0 0.0
    %560 = vmatprep.subr.mxu0 0.0
    %561 = vmatpush2.msra.mxu0 0.0
    %562 = vmatprep.subr.mxu0 0.0
    %563 = vmatpush2.msra.mxu0 0.0
    %564 = vmatprep.mubr.f32.mxu0 0.0
    %565 = vmatmul.mubr.f32.gmra.mxu0 0.0
    %v566 = vpop.f32.mrf.mxu0
    %v567 = vadd.f32 0.0, %v566
    %v568 = vpop.f32.mrf.mxu0
    %v569 = vadd.f32 0.0, %v568
    %570 = vdwg.mxu0
    %v571 = vadd.f32 %v361, %v496
    %v572 = vadd.f32 %v362, %v498
    %v573 = vadd.f32 %v363, %v567
    %v574 = vadd.f32 %v364, %v569
    %v575 = vxor.u32 %v571, 2147483648
    %v576 = vmul.f32 %v575, 1.442695
    %v577 = vpow.pop %v576
    %v578 = vadd.f32 %v577, 1.0
    %v579 = vrcp.pop %v578
    %v580 = vmul.f32 1.0, %v579
    %v581 = vxor.u32 %v572, 2147483648
    %v582 = vmul.f32 %v581, 1.442695
    %v583 = vpow.pop %v582
    %v584 = vadd.f32 %v583, 1.0
    %v585 = vrcp.pop %v584
    %v586 = vmul.f32 1.0, %v585
    %v587 = vtanh.pop %v573
    %v588 = vxor.u32 %v574, 2147483648
    %v589 = vmul.f32 %v588, 1.442695
    %v590 = vpow.pop %v589
    %v591 = vadd.f32 %v590, 1.0
    %v592 = vrcp.pop %v591
    %v593 = vmul.f32 1.0, %v592
    %v594 = vmul.f32 %v586, 0.0
    %v595 = vmul.f32 %v580, %v587
    %v596 = vadd.f32 %v594, %v595
    %v597 = vtanh.pop %v596
    %v598 = vmul.f32 %v593, %v597
    %s599 = smul.u32 1, 4
    %s600 = smul.addr %s599, 8
    %s601 = scalar_lea.vmem [#allocation2], %s600
    %v602 = vld [vmem:[%s601] sm:$0xff]
    %v603 = vld [vmem:[%s601 + $0x8] sm:$0xff]
    %v604 = vld [vmem:[%s601 + $0x10] sm:$0xff]
    %v605 = vld [vmem:[%s601 + $0x18] sm:$0xff]
    %606 = vmatprep.subr.mxu0 %v426
    %607 = vmatpush1.msra.mxu0 %v425
    %608 = vmatprep.subr.mxu0 %v422
    %609 = vmatpush1.msra.mxu0 %v421
    %610 = vmatprep.subr.mxu0 %v418
    %611 = vmatpush1.msra.mxu0 %v417
    %612 = vmatprep.subr.mxu0 %v414
    %613 = vmatpush1.msra.mxu0 %v413
    %614 = vmatprep.subr.mxu0 %v410
    %615 = vmatpush1.msra.mxu0 %v409
    %616 = vmatprep.subr.mxu0 %v406
    %617 = vmatpush1.msra.mxu0 %v405
    %618 = vmatprep.subr.mxu0 %v402
    %619 = vmatpush1.msra.mxu0 %v401
    %620 = vmatprep.subr.mxu0 %v398
    %621 = vmatpush1.msra.mxu0 %v397
    %622 = vmatprep.subr.mxu0 %v394
    %623 = vmatpush1.msra.mxu0 %v393
    %624 = vmatprep.subr.mxu0 %v390
    %625 = vmatpush1.msra.mxu0 %v389
    %626 = vmatprep.subr.mxu0 %v386
    %627 = vmatpush1.msra.mxu0 %v385
    %628 = vmatprep.subr.mxu0 %v382
    %629 = vmatpush1.msra.mxu0 %v381
    %630 = vmatprep.subr.mxu0 %v378
    %631 = vmatpush1.msra.mxu0 %v377
    %632 = vmatprep.subr.mxu0 %v374
    %633 = vmatpush1.msra.mxu0 %v373
    %634 = vmatprep.subr.mxu0 %v370
    %635 = vmatpush1.msra.mxu0 %v369
    %636 = vmatprep.subr.mxu0 %v366
    %637 = vmatpush1.msra.mxu0 %v365
    %638 = vmatprep.subr.mxu0 0.0
    %639 = vmatpush2.msra.mxu0 0.0
    %640 = vmatprep.subr.mxu0 0.0
    %641 = vmatpush2.msra.mxu0 0.0
    %642 = vmatprep.subr.mxu0 0.0
    %643 = vmatpush2.msra.mxu0 0.0
    %644 = vmatprep.subr.mxu0 0.0
    %645 = vmatpush2.msra.mxu0 0.0
    %646 = vmatprep.subr.mxu0 0.0
    %647 = vmatpush2.msra.mxu0 0.0
    %648 = vmatprep.subr.mxu0 0.0
    %649 = vmatpush2.msra.mxu0 0.0
    %650 = vmatprep.subr.mxu0 0.0
    %651 = vmatpush2.msra.mxu0 0.0
    %652 = vmatprep.subr.mxu0 0.0
    %653 = vmatpush2.msra.mxu0 0.0
    %654 = vmatprep.subr.mxu0 0.0
    %655 = vmatpush2.msra.mxu0 0.0
    %656 = vmatprep.subr.mxu0 0.0
    %657 = vmatpush2.msra.mxu0 0.0
    %658 = vmatprep.subr.mxu0 0.0
    %659 = vmatpush2.msra.mxu0 0.0
    %660 = vmatprep.subr.mxu0 0.0
    %661 = vmatpush2.msra.mxu0 0.0
    %662 = vmatprep.subr.mxu0 0.0
    %663 = vmatpush2.msra.mxu0 0.0
    %664 = vmatprep.subr.mxu0 0.0
    %665 = vmatpush2.msra.mxu0 0.0
    %666 = vmatprep.subr.mxu0 0.0
    %667 = vmatpush2.msra.mxu0 0.0
    %668 = vmatprep.subr.mxu0 0.0
    %669 = vmatpush2.msra.mxu0 0.0
    %670 = vmatprep.mubr.f32.mxu0 0.0
    %671 = vmatmul.mubr.f32.gmra.mxu0 %v598
    %v672 = vpop.f32.mrf.mxu0
    %v673 = vadd.f32 0.0, %v672
    %v674 = vpop.f32.mrf.mxu0
    %v675 = vadd.f32 0.0, %v674
    %676 = vdwg.mxu0
    %677 = vmatprep.subr.mxu0 %v428
    %678 = vmatpush1.msra.mxu0 %v427
    %679 = vmatprep.subr.mxu0 %v424
    %680 = vmatpush1.msra.mxu0 %v423
    %681 = vmatprep.subr.mxu0 %v420
    %682 = vmatpush1.msra.mxu0 %v419
    %683 = vmatprep.subr.mxu0 %v416
    %684 = vmatpush1.msra.mxu0 %v415
    %685 = vmatprep.subr.mxu0 %v412
    %686 = vmatpush1.msra.mxu0 %v411
    %687 = vmatprep.subr.mxu0 %v408
    %688 = vmatpush1.msra.mxu0 %v407
    %689 = vmatprep.subr.mxu0 %v404
    %690 = vmatpush1.msra.mxu0 %v403
    %691 = vmatprep.subr.mxu0 %v400
    %692 = vmatpush1.msra.mxu0 %v399
    %693 = vmatprep.subr.mxu0 %v396
    %694 = vmatpush1.msra.mxu0 %v395
    %695 = vmatprep.subr.mxu0 %v392
    %696 = vmatpush1.msra.mxu0 %v391
    %697 = vmatprep.subr.mxu0 %v388
    %698 = vmatpush1.msra.mxu0 %v387
    %699 = vmatprep.subr.mxu0 %v384
    %700 = vmatpush1.msra.mxu0 %v383
    %701 = vmatprep.subr.mxu0 %v380
    %702 = vmatpush1.msra.mxu0 %v379
    %703 = vmatprep.subr.mxu0 %v376
    %704 = vmatpush1.msra.mxu0 %v375
    %705 = vmatprep.subr.mxu0 %v372
    %706 = vmatpush1.msra.mxu0 %v371
    %707 = vmatprep.subr.mxu0 %v368
    %708 = vmatpush1.msra.mxu0 %v367
    %709 = vmatprep.subr.mxu0 0.0
    %710 = vmatpush2.msra.mxu0 0.0
    %711 = vmatprep.subr.mxu0 0.0
    %712 = vmatpush2.msra.mxu0 0.0
    %713 = vmatprep.subr.mxu0 0.0
    %714 = vmatpush2.msra.mxu0 0.0
    %715 = vmatprep.subr.mxu0 0.0
    %716 = vmatpush2.msra.mxu0 0.0
    %717 = vmatprep.subr.mxu0 0.0
    %718 = vmatpush2.msra.mxu0 0.0
    %719 = vmatprep.subr.mxu0 0.0
    %720 = vmatpush2.msra.mxu0 0.0
    %721 = vmatprep.subr.mxu0 0.0
    %722 = vmatpush2.msra.mxu0 0.0
    %723 = vmatprep.subr.mxu0 0.0
    %724 = vmatpush2.msra.mxu0 0.0
    %725 = vmatprep.subr.mxu0 0.0
    %726 = vmatpush2.msra.mxu0 0.0
    %727 = vmatprep.subr.mxu0 0.0
    %728 = vmatpush2.msra.mxu0 0.0
    %729 = vmatprep.subr.mxu0 0.0
    %730 = vmatpush2.msra.mxu0 0.0
    %731 = vmatprep.subr.mxu0 0.0
    %732 = vmatpush2.msra.mxu0 0.0
    %733 = vmatprep.subr.mxu0 0.0
    %734 = vmatpush2.msra.mxu0 0.0
    %735 = vmatprep.subr.mxu0 0.0
    %736 = vmatpush2.msra.mxu0 0.0
    %737 = vmatprep.subr.mxu0 0.0
    %738 = vmatpush2.msra.mxu0 0.0
    %739 = vmatprep.subr.mxu0 0.0
    %740 = vmatpush2.msra.mxu0 0.0
    %741 = vmatprep.mubr.f32.mxu0 0.0
    %742 = vmatmul.mubr.f32.gmra.mxu0 %v598
    %v743 = vpop.f32.mrf.mxu0
    %v744 = vadd.f32 0.0, %v743
    %v745 = vpop.f32.mrf.mxu0
    %v746 = vadd.f32 0.0, %v745
    %747 = vdwg.mxu0
    %v748 = vadd.f32 %v602, %v673
    %v749 = vadd.f32 %v603, %v675
    %v750 = vadd.f32 %v604, %v744
    %v751 = vadd.f32 %v605, %v746
    %v752 = vxor.u32 %v748, 2147483648
    %v753 = vmul.f32 %v752, 1.442695
    %v754 = vpow.pop %v753
    %v755 = vadd.f32 %v754, 1.0
    %v756 = vrcp.pop %v755
    %v757 = vmul.f32 1.0, %v756
    %v758 = vxor.u32 %v749, 2147483648
    %v759 = vmul.f32 %v758, 1.442695
    %v760 = vpow.pop %v759
    %v761 = vadd.f32 %v760, 1.0
    %v762 = vrcp.pop %v761
    %v763 = vmul.f32 1.0, %v762
    %v764 = vtanh.pop %v750
    %v765 = vxor.u32 %v751, 2147483648
    %v766 = vmul.f32 %v765, 1.442695
    %v767 = vpow.pop %v766
    %v768 = vadd.f32 %v767, 1.0
    %v769 = vrcp.pop %v768
    %v770 = vmul.f32 1.0, %v769
    %v771 = vmul.f32 %v763, %v596
    %v772 = vmul.f32 %v757, %v764
    %v773 = vadd.f32 %v771, %v772
    %v774 = vtanh.pop %v773
    %v775 = vmul.f32 %v770, %v774
    %s776 = smul.u32 2, 4
    %s777 = smul.addr %s776, 8
    %s778 = scalar_lea.vmem [#allocation2], %s777
    %v779 = vld [vmem:[%s778] sm:$0xff]
    %v780 = vld [vmem:[%s778 + $0x8] sm:$0xff]
    %v781 = vld [vmem:[%s778 + $0x10] sm:$0xff]
    %v782 = vld [vmem:[%s778 + $0x18] sm:$0xff]
    %783 = vmatprep.subr.mxu0 %v426
    %784 = vmatpush1.msra.mxu0 %v425
    %785 = vmatprep.subr.mxu0 %v422
    %786 = vmatpush1.msra.mxu0 %v421
    %787 = vmatprep.subr.mxu0 %v418
    %788 = vmatpush1.msra.mxu0 %v417
    %789 = vmatprep.subr.mxu0 %v414
    %790 = vmatpush1.msra.mxu0 %v413
    %791 = vmatprep.subr.mxu0 %v410
    %792 = vmatpush1.msra.mxu0 %v409
    %793 = vmatprep.subr.mxu0 %v406
    %794 = vmatpush1.msra.mxu0 %v405
    %795 = vmatprep.subr.mxu0 %v402
    %796 = vmatpush1.msra.mxu0 %v401
    %797 = vmatprep.subr.mxu0 %v398
    %798 = vmatpush1.msra.mxu0 %v397
    %799 = vmatprep.subr.mxu0 %v394
    %800 = vmatpush1.msra.mxu0 %v393
    %801 = vmatprep.subr.mxu0 %v390
    %802 = vmatpush1.msra.mxu0 %v389
    %803 = vmatprep.subr.mxu0 %v386
    %804 = vmatpush1.msra.mxu0 %v385
    %805 = vmatprep.subr.mxu0 %v382
    %806 = vmatpush1.msra.mxu0 %v381
    %807 = vmatprep.subr.mxu0 %v378
    %808 = vmatpush1.msra.mxu0 %v377
    %809 = vmatprep.subr.mxu0 %v374
    %810 = vmatpush1.msra.mxu0 %v373
    %811 = vmatprep.subr.mxu0 %v370
    %812 = vmatpush1.msra.mxu0 %v369
    %813 = vmatprep.subr.mxu0 %v366
    %814 = vmatpush1.msra.mxu0 %v365
    %815 = vmatprep.subr.mxu0 0.0
    %816 = vmatpush2.msra.mxu0 0.0
    %817 = vmatprep.subr.mxu0 0.0
    %818 = vmatpush2.msra.mxu0 0.0
    %819 = vmatprep.subr.mxu0 0.0
    %820 = vmatpush2.msra.mxu0 0.0
    %821 = vmatprep.subr.mxu0 0.0
    %822 = vmatpush2.msra.mxu0 0.0
    %823 = vmatprep.subr.mxu0 0.0
    %824 = vmatpush2.msra.mxu0 0.0
    %825 = vmatprep.subr.mxu0 0.0
    %826 = vmatpush2.msra.mxu0 0.0
    %827 = vmatprep.subr.mxu0 0.0
    %828 = vmatpush2.msra.mxu0 0.0
    %829 = vmatprep.subr.mxu0 0.0
    %830 = vmatpush2.msra.mxu0 0.0
    %831 = vmatprep.subr.mxu0 0.0
    %832 = vmatpush2.msra.mxu0 0.0
    %833 = vmatprep.subr.mxu0 0.0
    %834 = vmatpush2.msra.mxu0 0.0
    %835 = vmatprep.subr.mxu0 0.0
    %836 = vmatpush2.msra.mxu0 0.0
    %837 = vmatprep.subr.mxu0 0.0
    %838 = vmatpush2.msra.mxu0 0.0
    %839 = vmatprep.subr.mxu0 0.0
    %840 = vmatpush2.msra.mxu0 0.0
    %841 = vmatprep.subr.mxu0 0.0
    %842 = vmatpush2.msra.mxu0 0.0
    %843 = vmatprep.subr.mxu0 0.0
    %844 = vmatpush2.msra.mxu0 0.0
    %845 = vmatprep.subr.mxu0 0.0
    %846 = vmatpush2.msra.mxu0 0.0
    %847 = vmatprep.mubr.f32.mxu0 0.0
    %848 = vmatmul.mubr.f32.gmra.mxu0 %v775
    %v849 = vpop.f32.mrf.mxu0
    %v850 = vadd.f32 0.0, %v849
    %v851 = vpop.f32.mrf.mxu0
    %v852 = vadd.f32 0.0, %v851
    %853 = vdwg.mxu0
    %854 = vmatprep.subr.mxu0 %v428
    %855 = vmatpush1.msra.mxu0 %v427
    %856 = vmatprep.subr.mxu0 %v424
    %857 = vmatpush1.msra.mxu0 %v423
    %858 = vmatprep.subr.mxu0 %v420
    %859 = vmatpush1.msra.mxu0 %v419
    %860 = vmatprep.subr.mxu0 %v416
    %861 = vmatpush1.msra.mxu0 %v415
    %862 = vmatprep.subr.mxu0 %v412
    %863 = vmatpush1.msra.mxu0 %v411
    %864 = vmatprep.subr.mxu0 %v408
    %865 = vmatpush1.msra.mxu0 %v407
    %866 = vmatprep.subr.mxu0 %v404
    %867 = vmatpush1.msra.mxu0 %v403
    %868 = vmatprep.subr.mxu0 %v400
    %869 = vmatpush1.msra.mxu0 %v399
    %870 = vmatprep.subr.mxu0 %v396
    %871 = vmatpush1.msra.mxu0 %v395
    %872 = vmatprep.subr.mxu0 %v392
    %873 = vmatpush1.msra.mxu0 %v391
    %874 = vmatprep.subr.mxu0 %v388
    %875 = vmatpush1.msra.mxu0 %v387
    %876 = vmatprep.subr.mxu0 %v384
    %877 = vmatpush1.msra.mxu0 %v383
    %878 = vmatprep.subr.mxu0 %v380
    %879 = vmatpush1.msra.mxu0 %v379
    %880 = vmatprep.subr.mxu0 %v376
    %881 = vmatpush1.msra.mxu0 %v375
    %882 = vmatprep.subr.mxu0 %v372
    %883 = vmatpush1.msra.mxu0 %v371
    %884 = vmatprep.subr.mxu0 %v368
    %885 = vmatpush1.msra.mxu0 %v367
    %886 = vmatprep.subr.mxu0 0.0
    %887 = vmatpush2.msra.mxu0 0.0
    %888 = vmatprep.subr.mxu0 0.0
    %889 = vmatpush2.msra.mxu0 0.0
    %890 = vmatprep.subr.mxu0 0.0
    %891 = vmatpush2.msra.mxu0 0.0
    %892 = vmatprep.subr.mxu0 0.0
    %893 = vmatpush2.msra.mxu0 0.0
    %894 = vmatprep.subr.mxu0 0.0
    %895 = vmatpush2.msra.mxu0 0.0
    %896 = vmatprep.subr.mxu0 0.0
    %897 = vmatpush2.msra.mxu0 0.0
    %898 = vmatprep.subr.mxu0 0.0
    %899 = vmatpush2.msra.mxu0 0.0
    %900 = vmatprep.subr.mxu0 0.0
    %901 = vmatpush2.msra.mxu0 0.0
    %902 = vmatprep.subr.mxu0 0.0
    %903 = vmatpush2.msra.mxu0 0.0
    %904 = vmatprep.subr.mxu0 0.0
    %905 = vmatpush2.msra.mxu0 0.0
    %906 = vmatprep.subr.mxu0 0.0
    %907 = vmatpush2.msra.mxu0 0.0
    %908 = vmatprep.subr.mxu0 0.0
    %909 = vmatpush2.msra.mxu0 0.0
    %910 = vmatprep.subr.mxu0 0.0
    %911 = vmatpush2.msra.mxu0 0.0
    %912 = vmatprep.subr.mxu0 0.0
    %913 = vmatpush2.msra.mxu0 0.0
    %914 = vmatprep.subr.mxu0 0.0
    %915 = vmatpush2.msra.mxu0 0.0
    %916 = vmatprep.subr.mxu0 0.0
    %917 = vmatpush2.msra.mxu0 0.0
    %918 = vmatprep.mubr.f32.mxu0 0.0
    %919 = vmatmul.mubr.f32.gmra.mxu0 %v775
    %v920 = vpop.f32.mrf.mxu0
    %v921 = vadd.f32 0.0, %v920
    %v922 = vpop.f32.mrf.mxu0
    %v923 = vadd.f32 0.0, %v922
    %924 = vdwg.mxu0
    %v925 = vadd.f32 %v779, %v850
    %v926 = vadd.f32 %v780, %v852
    %v927 = vadd.f32 %v781, %v921
    %v928 = vadd.f32 %v782, %v923
    %v929 = vxor.u32 %v925, 2147483648
    %v930 = vmul.f32 %v929, 1.442695
    %v931 = vpow.pop %v930
    %v932 = vadd.f32 %v931, 1.0
    %v933 = vrcp.pop %v932
    %v934 = vmul.f32 1.0, %v933
    %v935 = vxor.u32 %v926, 2147483648
    %v936 = vmul.f32 %v935, 1.442695
    %v937 = vpow.pop %v936
    %v938 = vadd.f32 %v937, 1.0
    %v939 = vrcp.pop %v938
    %v940 = vmul.f32 1.0, %v939
    %v941 = vtanh.pop %v927
    %v942 = vxor.u32 %v928, 2147483648
    %v943 = vmul.f32 %v942, 1.442695
    %v944 = vpow.pop %v943
    %v945 = vadd.f32 %v944, 1.0
    %v946 = vrcp.pop %v945
    %v947 = vmul.f32 1.0, %v946
    %v948 = vmul.f32 %v940, %v773
    %v949 = vmul.f32 %v934, %v941
    %v950 = vadd.f32 %v948, %v949
    %v951 = vtanh.pop %v950
    %v952 = vmul.f32 %v947, %v951
    %s953 = smul.u32 3, 4
    %s954 = smul.addr %s953, 8
    %s955 = scalar_lea.vmem [#allocation2], %s954
    %v956 = vld [vmem:[%s955] sm:$0xff]
    %v957 = vld [vmem:[%s955 + $0x8] sm:$0xff]
    %v958 = vld [vmem:[%s955 + $0x10] sm:$0xff]
    %v959 = vld [vmem:[%s955 + $0x18] sm:$0xff]
    %960 = vmatprep.subr.mxu0 %v426
    %961 = vmatpush1.msra.mxu0 %v425
    %962 = vmatprep.subr.mxu0 %v422
    %963 = vmatpush1.msra.mxu0 %v421
    %964 = vmatprep.subr.mxu0 %v418
    %965 = vmatpush1.msra.mxu0 %v417
    %966 = vmatprep.subr.mxu0 %v414
    %967 = vmatpush1.msra.mxu0 %v413
    %968 = vmatprep.subr.mxu0 %v410
    %969 = vmatpush1.msra.mxu0 %v409
    %970 = vmatprep.subr.mxu0 %v406
    %971 = vmatpush1.msra.mxu0 %v405
    %972 = vmatprep.subr.mxu0 %v402
    %973 = vmatpush1.msra.mxu0 %v401
    %974 = vmatprep.subr.mxu0 %v398
    %975 = vmatpush1.msra.mxu0 %v397
    %976 = vmatprep.subr.mxu0 %v394
    %977 = vmatpush1.msra.mxu0 %v393
    %978 = vmatprep.subr.mxu0 %v390
    %979 = vmatpush1.msra.mxu0 %v389
    %980 = vmatprep.subr.mxu0 %v386
    %981 = vmatpush1.msra.mxu0 %v385
    %982 = vmatprep.subr.mxu0 %v382
    %983 = vmatpush1.msra.mxu0 %v381
    %984 = vmatprep.subr.mxu0 %v378
    %985 = vmatpush1.msra.mxu0 %v377
    %986 = vmatprep.subr.mxu0 %v374
    %987 = vmatpush1.msra.mxu0 %v373
    %988 = vmatprep.subr.mxu0 %v370
    %989 = vmatpush1.msra.mxu0 %v369
    %990 = vmatprep.subr.mxu0 %v366
    %991 = vmatpush1.msra.mxu0 %v365
    %992 = vmatprep.subr.mxu0 0.0
    %993 = vmatpush2.msra.mxu0 0.0
    %994 = vmatprep.subr.mxu0 0.0
    %995 = vmatpush2.msra.mxu0 0.0
    %996 = vmatprep.subr.mxu0 0.0
    %997 = vmatpush2.msra.mxu0 0.0
    %998 = vmatprep.subr.mxu0 0.0
    %999 = vmatpush2.msra.mxu0 0.0
    %1000 = vmatprep.subr.mxu0 0.0
    %1001 = vmatpush2.msra.mxu0 0.0
    %1002 = vmatprep.subr.mxu0 0.0
    %1003 = vmatpush2.msra.mxu0 0.0
    %1004 = vmatprep.subr.mxu0 0.0
    %1005 = vmatpush2.msra.mxu0 0.0
    %1006 = vmatprep.subr.mxu0 0.0
    %1007 = vmatpush2.msra.mxu0 0.0
    %1008 = vmatprep.subr.mxu0 0.0
    %1009 = vmatpush2.msra.mxu0 0.0
    %1010 = vmatprep.subr.mxu0 0.0
    %1011 = vmatpush2.msra.mxu0 0.0
    %1012 = vmatprep.subr.mxu0 0.0
    %1013 = vmatpush2.msra.mxu0 0.0
    %1014 = vmatprep.subr.mxu0 0.0
    %1015 = vmatpush2.msra.mxu0 0.0
    %1016 = vmatprep.subr.mxu0 0.0
    %1017 = vmatpush2.msra.mxu0 0.0
    %1018 = vmatprep.subr.mxu0 0.0
    %1019 = vmatpush2.msra.mxu0 0.0
    %1020 = vmatprep.subr.mxu0 0.0
    %1021 = vmatpush2.msra.mxu0 0.0
    %1022 = vmatprep.subr.mxu0 0.0
    %1023 = vmatpush2.msra.mxu0 0.0
    %1024 = vmatprep.mubr.f32.mxu0 0.0
    %1025 = vmatmul.mubr.f32.gmra.mxu0 %v952
    %v1026 = vpop.f32.mrf.mxu0
    %v1027 = vadd.f32 0.0, %v1026
    %v1028 = vpop.f32.mrf.mxu0
    %v1029 = vadd.f32 0.0, %v1028
    %1030 = vdwg.mxu0
    %1031 = vmatprep.subr.mxu0 %v428
    %1032 = vmatpush1.msra.mxu0 %v427
    %1033 = vmatprep.subr.mxu0 %v424
    %1034 = vmatpush1.msra.mxu0 %v423
    %1035 = vmatprep.subr.mxu0 %v420
    %1036 = vmatpush1.msra.mxu0 %v419
    %1037 = vmatprep.subr.mxu0 %v416
    %1038 = vmatpush1.msra.mxu0 %v415
    %1039 = vmatprep.subr.mxu0 %v412
    %1040 = vmatpush1.msra.mxu0 %v411
    %1041 = vmatprep.subr.mxu0 %v408
    %1042 = vmatpush1.msra.mxu0 %v407
    %1043 = vmatprep.subr.mxu0 %v404
    %1044 = vmatpush1.msra.mxu0 %v403
    %1045 = vmatprep.subr.mxu0 %v400
    %1046 = vmatpush1.msra.mxu0 %v399
    %1047 = vmatprep.subr.mxu0 %v396
    %1048 = vmatpush1.msra.mxu0 %v395
    %1049 = vmatprep.subr.mxu0 %v392
    %1050 = vmatpush1.msra.mxu0 %v391
    %1051 = vmatprep.subr.mxu0 %v388
    %1052 = vmatpush1.msra.mxu0 %v387
    %1053 = vmatprep.subr.mxu0 %v384
    %1054 = vmatpush1.msra.mxu0 %v383
    %1055 = vmatprep.subr.mxu0 %v380
    %1056 = vmatpush1.msra.mxu0 %v379
    %1057 = vmatprep.subr.mxu0 %v376
    %1058 = vmatpush1.msra.mxu0 %v375
    %1059 = vmatprep.subr.mxu0 %v372
    %1060 = vmatpush1.msra.mxu0 %v371
    %1061 = vmatprep.subr.mxu0 %v368
    %1062 = vmatpush1.msra.mxu0 %v367
    %1063 = vmatprep.subr.mxu0 0.0
    %1064 = vmatpush2.msra.mxu0 0.0
    %1065 = vmatprep.subr.mxu0 0.0
    %1066 = vmatpush2.msra.mxu0 0.0
    %1067 = vmatprep.subr.mxu0 0.0
    %1068 = vmatpush2.msra.mxu0 0.0
    %1069 = vmatprep.subr.mxu0 0.0
    %1070 = vmatpush2.msra.mxu0 0.0
    %1071 = vmatprep.subr.mxu0 0.0
    %1072 = vmatpush2.msra.mxu0 0.0
    %1073 = vmatprep.subr.mxu0 0.0
    %1074 = vmatpush2.msra.mxu0 0.0
    %1075 = vmatprep.subr.mxu0 0.0
    %1076 = vmatpush2.msra.mxu0 0.0
    %1077 = vmatprep.subr.mxu0 0.0
    %1078 = vmatpush2.msra.mxu0 0.0
    %1079 = vmatprep.subr.mxu0 0.0
    %1080 = vmatpush2.msra.mxu0 0.0
    %1081 = vmatprep.subr.mxu0 0.0
    %1082 = vmatpush2.msra.mxu0 0.0
    %1083 = vmatprep.subr.mxu0 0.0
    %1084 = vmatpush2.msra.mxu0 0.0
    %1085 = vmatprep.subr.mxu0 0.0
    %1086 = vmatpush2.msra.mxu0 0.0
    %1087 = vmatprep.subr.mxu0 0.0
    %1088 = vmatpush2.msra.mxu0 0.0
    %1089 = vmatprep.subr.mxu0 0.0
    %1090 = vmatpush2.msra.mxu0 0.0
    %1091 = vmatprep.subr.mxu0 0.0
    %1092 = vmatpush2.msra.mxu0 0.0
    %1093 = vmatprep.subr.mxu0 0.0
    %1094 = vmatpush2.msra.mxu0 0.0
    %1095 = vmatprep.mubr.f32.mxu0 0.0
    %1096 = vmatmul.mubr.f32.gmra.mxu0 %v952
    %v1097 = vpop.f32.mrf.mxu0
    %v1098 = vadd.f32 0.0, %v1097
    %v1099 = vpop.f32.mrf.mxu0
    %v1100 = vadd.f32 0.0, %v1099
    %1101 = vdwg.mxu0
    %v1102 = vadd.f32 %v956, %v1027
    %v1103 = vadd.f32 %v957, %v1029
    %v1104 = vadd.f32 %v958, %v1098
    %v1105 = vadd.f32 %v959, %v1100
    %v1106 = vxor.u32 %v1102, 2147483648
    %v1107 = vmul.f32 %v1106, 1.442695
    %v1108 = vpow.pop %v1107
    %v1109 = vadd.f32 %v1108, 1.0
    %v1110 = vrcp.pop %v1109
    %v1111 = vmul.f32 1.0, %v1110
    %v1112 = vxor.u32 %v1103, 2147483648
    %v1113 = vmul.f32 %v1112, 1.442695
    %v1114 = vpow.pop %v1113
    %v1115 = vadd.f32 %v1114, 1.0
    %v1116 = vrcp.pop %v1115
    %v1117 = vmul.f32 1.0, %v1116
    %v1118 = vtanh.pop %v1104
    %v1119 = vxor.u32 %v1105, 2147483648
    %v1120 = vmul.f32 %v1119, 1.442695
    %v1121 = vpow.pop %v1120
    %v1122 = vadd.f32 %v1121, 1.0
    %v1123 = vrcp.pop %v1122
    %v1124 = vmul.f32 1.0, %v1123
    %v1125 = vmul.f32 %v1117, %v950
    %v1126 = vmul.f32 %v1111, %v1118
    %v1127 = vadd.f32 %v1125, %v1126
    %v1128 = vtanh.pop %v1127
    %v1129 = vmul.f32 %v1124, %v1128
    %s1130 = smul.u32 4, 4
    %s1131 = smul.addr %s1130, 8
    %s1132 = scalar_lea.vmem [#allocation2], %s1131
    %v1133 = vld [vmem:[%s1132] sm:$0xff]
    %v1134 = vld [vmem:[%s1132 + $0x8] sm:$0xff]
    %v1135 = vld [vmem:[%s1132 + $0x10] sm:$0xff]
    %v1136 = vld [vmem:[%s1132 + $0x18] sm:$0xff]
    %1137 = vmatprep.subr.mxu0 %v426
    %1138 = vmatpush1.msra.mxu0 %v425
    %1139 = vmatprep.subr.mxu0 %v422
    %1140 = vmatpush1.msra.mxu0 %v421
    %1141 = vmatprep.subr.mxu0 %v418
    %1142 = vmatpush1.msra.mxu0 %v417
    %1143 = vmatprep.subr.mxu0 %v414
    %1144 = vmatpush1.msra.mxu0 %v413
    %1145 = vmatprep.subr.mxu0 %v410
    %1146 = vmatpush1.msra.mxu0 %v409
    %1147 = vmatprep.subr.mxu0 %v406
    %1148 = vmatpush1.msra.mxu0 %v405
    %1149 = vmatprep.subr.mxu0 %v402
    %1150 = vmatpush1.msra.mxu0 %v401
    %1151 = vmatprep.subr.mxu0 %v398
    %1152 = vmatpush1.msra.mxu0 %v397
    %1153 = vmatprep.subr.mxu0 %v394
    %1154 = vmatpush1.msra.mxu0 %v393
    %1155 = vmatprep.subr.mxu0 %v390
    %1156 = vmatpush1.msra.mxu0 %v389
    %1157 = vmatprep.subr.mxu0 %v386
    %1158 = vmatpush1.msra.mxu0 %v385
    %1159 = vmatprep.subr.mxu0 %v382
    %1160 = vmatpush1.msra.mxu0 %v381
    %1161 = vmatprep.subr.mxu0 %v378
    %1162 = vmatpush1.msra.mxu0 %v377
    %1163 = vmatprep.subr.mxu0 %v374
    %1164 = vmatpush1.msra.mxu0 %v373
    %1165 = vmatprep.subr.mxu0 %v370
    %1166 = vmatpush1.msra.mxu0 %v369
    %1167 = vmatprep.subr.mxu0 %v366
    %1168 = vmatpush1.msra.mxu0 %v365
    %1169 = vmatprep.subr.mxu0 0.0
    %1170 = vmatpush2.msra.mxu0 0.0
    %1171 = vmatprep.subr.mxu0 0.0
    %1172 = vmatpush2.msra.mxu0 0.0
    %1173 = vmatprep.subr.mxu0 0.0
    %1174 = vmatpush2.msra.mxu0 0.0
    %1175 = vmatprep.subr.mxu0 0.0
    %1176 = vmatpush2.msra.mxu0 0.0
    %1177 = vmatprep.subr.mxu0 0.0
    %1178 = vmatpush2.msra.mxu0 0.0
    %1179 = vmatprep.subr.mxu0 0.0
    %1180 = vmatpush2.msra.mxu0 0.0
    %1181 = vmatprep.subr.mxu0 0.0
    %1182 = vmatpush2.msra.mxu0 0.0
    %1183 = vmatprep.subr.mxu0 0.0
    %1184 = vmatpush2.msra.mxu0 0.0
    %1185 = vmatprep.subr.mxu0 0.0
    %1186 = vmatpush2.msra.mxu0 0.0
    %1187 = vmatprep.subr.mxu0 0.0
    %1188 = vmatpush2.msra.mxu0 0.0
    %1189 = vmatprep.subr.mxu0 0.0
    %1190 = vmatpush2.msra.mxu0 0.0
    %1191 = vmatprep.subr.mxu0 0.0
    %1192 = vmatpush2.msra.mxu0 0.0
    %1193 = vmatprep.subr.mxu0 0.0
    %1194 = vmatpush2.msra.mxu0 0.0
    %1195 = vmatprep.subr.mxu0 0.0
    %1196 = vmatpush2.msra.mxu0 0.0
    %1197 = vmatprep.subr.mxu0 0.0
    %1198 = vmatpush2.msra.mxu0 0.0
    %1199 = vmatprep.subr.mxu0 0.0
    %1200 = vmatpush2.msra.mxu0 0.0
    %1201 = vmatprep.mubr.f32.mxu0 0.0
    %1202 = vmatmul.mubr.f32.gmra.mxu0 %v1129
    %v1203 = vpop.f32.mrf.mxu0
    %v1204 = vadd.f32 0.0, %v1203
    %v1205 = vpop.f32.mrf.mxu0
    %v1206 = vadd.f32 0.0, %v1205
    %1207 = vdwg.mxu0
    %1208 = vmatprep.subr.mxu0 %v428
    %1209 = vmatpush1.msra.mxu0 %v427
    %1210 = vmatprep.subr.mxu0 %v424
    %1211 = vmatpush1.msra.mxu0 %v423
    %1212 = vmatprep.subr.mxu0 %v420
    %1213 = vmatpush1.msra.mxu0 %v419
    %1214 = vmatprep.subr.mxu0 %v416
    %1215 = vmatpush1.msra.mxu0 %v415
    %1216 = vmatprep.subr.mxu0 %v412
    %1217 = vmatpush1.msra.mxu0 %v411
    %1218 = vmatprep.subr.mxu0 %v408
    %1219 = vmatpush1.msra.mxu0 %v407
    %1220 = vmatprep.subr.mxu0 %v404
    %1221 = vmatpush1.msra.mxu0 %v403
    %1222 = vmatprep.subr.mxu0 %v400
    %1223 = vmatpush1.msra.mxu0 %v399
    %1224 = vmatprep.subr.mxu0 %v396
    %1225 = vmatpush1.msra.mxu0 %v395
    %1226 = vmatprep.subr.mxu0 %v392
    %1227 = vmatpush1.msra.mxu0 %v391
    %1228 = vmatprep.subr.mxu0 %v388
    %1229 = vmatpush1.msra.mxu0 %v387
    %1230 = vmatprep.subr.mxu0 %v384
    %1231 = vmatpush1.msra.mxu0 %v383
    %1232 = vmatprep.subr.mxu0 %v380
    %1233 = vmatpush1.msra.mxu0 %v379
    %1234 = vmatprep.subr.mxu0 %v376
    %1235 = vmatpush1.msra.mxu0 %v375
    %1236 = vmatprep.subr.mxu0 %v372
    %1237 = vmatpush1.msra.mxu0 %v371
    %1238 = vmatprep.subr.mxu0 %v368
    %1239 = vmatpush1.msra.mxu0 %v367
    %1240 = vmatprep.subr.mxu0 0.0
    %1241 = vmatpush2.msra.mxu0 0.0
    %1242 = vmatprep.subr.mxu0 0.0
    %1243 = vmatpush2.msra.mxu0 0.0
    %1244 = vmatprep.subr.mxu0 0.0
    %1245 = vmatpush2.msra.mxu0 0.0
    %1246 = vmatprep.subr.mxu0 0.0
    %1247 = vmatpush2.msra.mxu0 0.0
    %1248 = vmatprep.subr.mxu0 0.0
    %1249 = vmatpush2.msra.mxu0 0.0
    %1250 = vmatprep.subr.mxu0 0.0
    %1251 = vmatpush2.msra.mxu0 0.0
    %1252 = vmatprep.subr.mxu0 0.0
    %1253 = vmatpush2.msra.mxu0 0.0
    %1254 = vmatprep.subr.mxu0 0.0
    %1255 = vmatpush2.msra.mxu0 0.0
    %1256 = vmatprep.subr.mxu0 0.0
    %1257 = vmatpush2.msra.mxu0 0.0
    %1258 = vmatprep.subr.mxu0 0.0
    %1259 = vmatpush2.msra.mxu0 0.0
    %1260 = vmatprep.subr.mxu0 0.0
    %1261 = vmatpush2.msra.mxu0 0.0
    %1262 = vmatprep.subr.mxu0 0.0
    %1263 = vmatpush2.msra.mxu0 0.0
    %1264 = vmatprep.subr.mxu0 0.0
    %1265 = vmatpush2.msra.mxu0 0.0
    %1266 = vmatprep.subr.mxu0 0.0
    %1267 = vmatpush2.msra.mxu0 0.0
    %1268 = vmatprep.subr.mxu0 0.0
    %1269 = vmatpush2.msra.mxu0 0.0
    %1270 = vmatprep.subr.mxu0 0.0
    %1271 = vmatpush2.msra.mxu0 0.0
    %1272 = vmatprep.mubr.f32.mxu0 0.0
    %1273 = vmatmul.mubr.f32.gmra.mxu0 %v1129
    %v1274 = vpop.f32.mrf.mxu0
    %v1275 = vadd.f32 0.0, %v1274
    %v1276 = vpop.f32.mrf.mxu0
    %v1277 = vadd.f32 0.0, %v1276
    %1278 = vdwg.mxu0
    %v1279 = vadd.f32 %v1133, %v1204
    %v1280 = vadd.f32 %v1134, %v1206
    %v1281 = vadd.f32 %v1135, %v1275
    %v1282 = vadd.f32 %v1136, %v1277
    %v1283 = vxor.u32 %v1279, 2147483648
    %v1284 = vmul.f32 %v1283, 1.442695
    %v1285 = vpow.pop %v1284
    %v1286 = vadd.f32 %v1285, 1.0
    %v1287 = vrcp.pop %v1286
    %v1288 = vmul.f32 1.0, %v1287
    %v1289 = vxor.u32 %v1280, 2147483648
    %v1290 = vmul.f32 %v1289, 1.442695
    %v1291 = vpow.pop %v1290
    %v1292 = vadd.f32 %v1291, 1.0
    %v1293 = vrcp.pop %v1292
    %v1294 = vmul.f32 1.0, %v1293
    %v1295 = vtanh.pop %v1281
    %v1296 = vxor.u32 %v1282, 2147483648
    %v1297 = vmul.f32 %v1296, 1.442695
    %v1298 = vpow.pop %v1297
    %v1299 = vadd.f32 %v1298, 1.0
    %v1300 = vrcp.pop %v1299
    %v1301 = vmul.f32 1.0, %v1300
    %v1302 = vmul.f32 %v1294, %v1127
    %v1303 = vmul.f32 %v1288, %v1295
    %v1304 = vadd.f32 %v1302, %v1303
    %v1305 = vtanh.pop %v1304
    %v1306 = vmul.f32 %v1301, %v1305
    %s1307 = smul.u32 5, 4
    %s1308 = smul.addr %s1307, 8
    %s1309 = scalar_lea.vmem [#allocation2], %s1308
    %v1310 = vld [vmem:[%s1309] sm:$0xff]
    %v1311 = vld [vmem:[%s1309 + $0x8] sm:$0xff]
    %v1312 = vld [vmem:[%s1309 + $0x10] sm:$0xff]
    %v1313 = vld [vmem:[%s1309 + $0x18] sm:$0xff]
    %1314 = vmatprep.subr.mxu0 %v426
    %1315 = vmatpush1.msra.mxu0 %v425
    %1316 = vmatprep.subr.mxu0 %v422
    %1317 = vmatpush1.msra.mxu0 %v421
    %1318 = vmatprep.subr.mxu0 %v418
    %1319 = vmatpush1.msra.mxu0 %v417
    %1320 = vmatprep.subr.mxu0 %v414
    %1321 = vmatpush1.msra.mxu0 %v413
    %1322 = vmatprep.subr.mxu0 %v410
    %1323 = vmatpush1.msra.mxu0 %v409
    %1324 = vmatprep.subr.mxu0 %v406
    %1325 = vmatpush1.msra.mxu0 %v405
    %1326 = vmatprep.subr.mxu0 %v402
    %1327 = vmatpush1.msra.mxu0 %v401
    %1328 = vmatprep.subr.mxu0 %v398
    %1329 = vmatpush1.msra.mxu0 %v397
    %1330 = vmatprep.subr.mxu0 %v394
    %1331 = vmatpush1.msra.mxu0 %v393
    %1332 = vmatprep.subr.mxu0 %v390
    %1333 = vmatpush1.msra.mxu0 %v389
    %1334 = vmatprep.subr.mxu0 %v386
    %1335 = vmatpush1.msra.mxu0 %v385
    %1336 = vmatprep.subr.mxu0 %v382
    %1337 = vmatpush1.msra.mxu0 %v381
    %1338 = vmatprep.subr.mxu0 %v378
    %1339 = vmatpush1.msra.mxu0 %v377
    %1340 = vmatprep.subr.mxu0 %v374
    %1341 = vmatpush1.msra.mxu0 %v373
    %1342 = vmatprep.subr.mxu0 %v370
    %1343 = vmatpush1.msra.mxu0 %v369
    %1344 = vmatprep.subr.mxu0 %v366
    %1345 = vmatpush1.msra.mxu0 %v365
    %1346 = vmatprep.subr.mxu0 0.0
    %1347 = vmatpush2.msra.mxu0 0.0
    %1348 = vmatprep.subr.mxu0 0.0
    %1349 = vmatpush2.msra.mxu0 0.0
    %1350 = vmatprep.subr.mxu0 0.0
    %1351 = vmatpush2.msra.mxu0 0.0
    %1352 = vmatprep.subr.mxu0 0.0
    %1353 = vmatpush2.msra.mxu0 0.0
    %1354 = vmatprep.subr.mxu0 0.0
    %1355 = vmatpush2.msra.mxu0 0.0
    %1356 = vmatprep.subr.mxu0 0.0
    %1357 = vmatpush2.msra.mxu0 0.0
    %1358 = vmatprep.subr.mxu0 0.0
    %1359 = vmatpush2.msra.mxu0 0.0
    %1360 = vmatprep.subr.mxu0 0.0
    %1361 = vmatpush2.msra.mxu0 0.0
    %1362 = vmatprep.subr.mxu0 0.0
    %1363 = vmatpush2.msra.mxu0 0.0
    %1364 = vmatprep.subr.mxu0 0.0
    %1365 = vmatpush2.msra.mxu0 0.0
    %1366 = vmatprep.subr.mxu0 0.0
    %1367 = vmatpush2.msra.mxu0 0.0
    %1368 = vmatprep.subr.mxu0 0.0
    %1369 = vmatpush2.msra.mxu0 0.0
    %1370 = vmatprep.subr.mxu0 0.0
    %1371 = vmatpush2.msra.mxu0 0.0
    %1372 = vmatprep.subr.mxu0 0.0
    %1373 = vmatpush2.msra.mxu0 0.0
    %1374 = vmatprep.subr.mxu0 0.0
    %1375 = vmatpush2.msra.mxu0 0.0
    %1376 = vmatprep.subr.mxu0 0.0
    %1377 = vmatpush2.msra.mxu0 0.0
    %1378 = vmatprep.mubr.f32.mxu0 0.0
    %1379 = vmatmul.mubr.f32.gmra.mxu0 %v1306
    %v1380 = vpop.f32.mrf.mxu0
    %v1381 = vadd.f32 0.0, %v1380
    %v1382 = vpop.f32.mrf.mxu0
    %v1383 = vadd.f32 0.0, %v1382
    %1384 = vdwg.mxu0
    %1385 = vmatprep.subr.mxu0 %v428
    %1386 = vmatpush1.msra.mxu0 %v427
    %1387 = vmatprep.subr.mxu0 %v424
    %1388 = vmatpush1.msra.mxu0 %v423
    %1389 = vmatprep.subr.mxu0 %v420
    %1390 = vmatpush1.msra.mxu0 %v419
    %1391 = vmatprep.subr.mxu0 %v416
    %1392 = vmatpush1.msra.mxu0 %v415
    %1393 = vmatprep.subr.mxu0 %v412
    %1394 = vmatpush1.msra.mxu0 %v411
    %1395 = vmatprep.subr.mxu0 %v408
    %1396 = vmatpush1.msra.mxu0 %v407
    %1397 = vmatprep.subr.mxu0 %v404
    %1398 = vmatpush1.msra.mxu0 %v403
    %1399 = vmatprep.subr.mxu0 %v400
    %1400 = vmatpush1.msra.mxu0 %v399
    %1401 = vmatprep.subr.mxu0 %v396
    %1402 = vmatpush1.msra.mxu0 %v395
    %1403 = vmatprep.subr.mxu0 %v392
    %1404 = vmatpush1.msra.mxu0 %v391
    %1405 = vmatprep.subr.mxu0 %v388
    %1406 = vmatpush1.msra.mxu0 %v387
    %1407 = vmatprep.subr.mxu0 %v384
    %1408 = vmatpush1.msra.mxu0 %v383
    %1409 = vmatprep.subr.mxu0 %v380
    %1410 = vmatpush1.msra.mxu0 %v379
    %1411 = vmatprep.subr.mxu0 %v376
    %1412 = vmatpush1.msra.mxu0 %v375
    %1413 = vmatprep.subr.mxu0 %v372
    %1414 = vmatpush1.msra.mxu0 %v371
    %1415 = vmatprep.subr.mxu0 %v368
    %1416 = vmatpush1.msra.mxu0 %v367
    %1417 = vmatprep.subr.mxu0 0.0
    %1418 = vmatpush2.msra.mxu0 0.0
    %1419 = vmatprep.subr.mxu0 0.0
    %1420 = vmatpush2.msra.mxu0 0.0
    %1421 = vmatprep.subr.mxu0 0.0
    %1422 = vmatpush2.msra.mxu0 0.0
    %1423 = vmatprep.subr.mxu0 0.0
    %1424 = vmatpush2.msra.mxu0 0.0
    %1425 = vmatprep.subr.mxu0 0.0
    %1426 = vmatpush2.msra.mxu0 0.0
    %1427 = vmatprep.subr.mxu0 0.0
    %1428 = vmatpush2.msra.mxu0 0.0
    %1429 = vmatprep.subr.mxu0 0.0
    %1430 = vmatpush2.msra.mxu0 0.0
    %1431 = vmatprep.subr.mxu0 0.0
    %1432 = vmatpush2.msra.mxu0 0.0
    %1433 = vmatprep.subr.mxu0 0.0
    %1434 = vmatpush2.msra.mxu0 0.0
    %1435 = vmatprep.subr.mxu0 0.0
    %1436 = vmatpush2.msra.mxu0 0.0
    %1437 = vmatprep.subr.mxu0 0.0
    %1438 = vmatpush2.msra.mxu0 0.0
    %1439 = vmatprep.subr.mxu0 0.0
    %1440 = vmatpush2.msra.mxu0 0.0
    %1441 = vmatprep.subr.mxu0 0.0
    %1442 = vmatpush2.msra.mxu0 0.0
    %1443 = vmatprep.subr.mxu0 0.0
    %1444 = vmatpush2.msra.mxu0 0.0
    %1445 = vmatprep.subr.mxu0 0.0
    %1446 = vmatpush2.msra.mxu0 0.0
    %1447 = vmatprep.subr.mxu0 0.0
    %1448 = vmatpush2.msra.mxu0 0.0
    %1449 = vmatprep.mubr.f32.mxu0 0.0
    %1450 = vmatmul.mubr.f32.gmra.mxu0 %v1306
    %v1451 = vpop.f32.mrf.mxu0
    %v1452 = vadd.f32 0.0, %v1451
    %v1453 = vpop.f32.mrf.mxu0
    %v1454 = vadd.f32 0.0, %v1453
    %1455 = vdwg.mxu0
    %v1456 = vadd.f32 %v1310, %v1381
    %v1457 = vadd.f32 %v1311, %v1383
    %v1458 = vadd.f32 %v1312, %v1452
    %v1459 = vadd.f32 %v1313, %v1454
    %v1460 = vxor.u32 %v1456, 2147483648
    %v1461 = vmul.f32 %v1460, 1.442695
    %v1462 = vpow.pop %v1461
    %v1463 = vadd.f32 %v1462, 1.0
    %v1464 = vrcp.pop %v1463
    %v1465 = vmul.f32 1.0, %v1464
    %v1466 = vxor.u32 %v1457, 2147483648
    %v1467 = vmul.f32 %v1466, 1.442695
    %v1468 = vpow.pop %v1467
    %v1469 = vadd.f32 %v1468, 1.0
    %v1470 = vrcp.pop %v1469
    %v1471 = vmul.f32 1.0, %v1470
    %v1472 = vtanh.pop %v1458
    %v1473 = vxor.u32 %v1459, 2147483648
    %v1474 = vmul.f32 %v1473, 1.442695
    %v1475 = vpow.pop %v1474
    %v1476 = vadd.f32 %v1475, 1.0
    %v1477 = vrcp.pop %v1476
    %v1478 = vmul.f32 1.0, %v1477
    %v1479 = vmul.f32 %v1471, %v1304
    %v1480 = vmul.f32 %v1465, %v1472
    %v1481 = vadd.f32 %v1479, %v1480
    %v1482 = vtanh.pop %v1481
    %v1483 = vmul.f32 %v1478, %v1482
    %s1484 = smul.u32 6, 4
    %s1485 = smul.addr %s1484, 8
    %s1486 = scalar_lea.vmem [#allocation2], %s1485
    %v1487 = vld [vmem:[%s1486] sm:$0xff]
    %v1488 = vld [vmem:[%s1486 + $0x8] sm:$0xff]
    %v1489 = vld [vmem:[%s1486 + $0x10] sm:$0xff]
    %v1490 = vld [vmem:[%s1486 + $0x18] sm:$0xff]
    %1491 = vmatprep.subr.mxu0 %v426
    %1492 = vmatpush1.msra.mxu0 %v425
    %1493 = vmatprep.subr.mxu0 %v422
    %1494 = vmatpush1.msra.mxu0 %v421
    %1495 = vmatprep.subr.mxu0 %v418
    %1496 = vmatpush1.msra.mxu0 %v417
    %1497 = vmatprep.subr.mxu0 %v414
    %1498 = vmatpush1.msra.mxu0 %v413
    %1499 = vmatprep.subr.mxu0 %v410
    %1500 = vmatpush1.msra.mxu0 %v409
    %1501 = vmatprep.subr.mxu0 %v406
    %1502 = vmatpush1.msra.mxu0 %v405
    %1503 = vmatprep.subr.mxu0 %v402
    %1504 = vmatpush1.msra.mxu0 %v401
    %1505 = vmatprep.subr.mxu0 %v398
    %1506 = vmatpush1.msra.mxu0 %v397
    %1507 = vmatprep.subr.mxu0 %v394
    %1508 = vmatpush1.msra.mxu0 %v393
    %1509 = vmatprep.subr.mxu0 %v390
    %1510 = vmatpush1.msra.mxu0 %v389
    %1511 = vmatprep.subr.mxu0 %v386
    %1512 = vmatpush1.msra.mxu0 %v385
    %1513 = vmatprep.subr.mxu0 %v382
    %1514 = vmatpush1.msra.mxu0 %v381
    %1515 = vmatprep.subr.mxu0 %v378
    %1516 = vmatpush1.msra.mxu0 %v377
    %1517 = vmatprep.subr.mxu0 %v374
    %1518 = vmatpush1.msra.mxu0 %v373
    %1519 = vmatprep.subr.mxu0 %v370
    %1520 = vmatpush1.msra.mxu0 %v369
    %1521 = vmatprep.subr.mxu0 %v366
    %1522 = vmatpush1.msra.mxu0 %v365
    %1523 = vmatprep.subr.mxu0 0.0
    %1524 = vmatpush2.msra.mxu0 0.0
    %1525 = vmatprep.subr.mxu0 0.0
    %1526 = vmatpush2.msra.mxu0 0.0
    %1527 = vmatprep.subr.mxu0 0.0
    %1528 = vmatpush2.msra.mxu0 0.0
    %1529 = vmatprep.subr.mxu0 0.0
    %1530 = vmatpush2.msra.mxu0 0.0
    %1531 = vmatprep.subr.mxu0 0.0
    %1532 = vmatpush2.msra.mxu0 0.0
    %1533 = vmatprep.subr.mxu0 0.0
    %1534 = vmatpush2.msra.mxu0 0.0
    %1535 = vmatprep.subr.mxu0 0.0
    %1536 = vmatpush2.msra.mxu0 0.0
    %1537 = vmatprep.subr.mxu0 0.0
    %1538 = vmatpush2.msra.mxu0 0.0
    %1539 = vmatprep.subr.mxu0 0.0
    %1540 = vmatpush2.msra.mxu0 0.0
    %1541 = vmatprep.subr.mxu0 0.0
    %1542 = vmatpush2.msra.mxu0 0.0
    %1543 = vmatprep.subr.mxu0 0.0
    %1544 = vmatpush2.msra.mxu0 0.0
    %1545 = vmatprep.subr.mxu0 0.0
    %1546 = vmatpush2.msra.mxu0 0.0
    %1547 = vmatprep.subr.mxu0 0.0
    %1548 = vmatpush2.msra.mxu0 0.0
    %1549 = vmatprep.subr.mxu0 0.0
    %1550 = vmatpush2.msra.mxu0 0.0
    %1551 = vmatprep.subr.mxu0 0.0
    %1552 = vmatpush2.msra.mxu0 0.0
    %1553 = vmatprep.subr.mxu0 0.0
    %1554 = vmatpush2.msra.mxu0 0.0
    %1555 = vmatprep.mubr.f32.mxu0 0.0
    %1556 = vmatmul.mubr.f32.gmra.mxu0 %v1483
    %v1557 = vpop.f32.mrf.mxu0
    %v1558 = vadd.f32 0.0, %v1557
    %v1559 = vpop.f32.mrf.mxu0
    %v1560 = vadd.f32 0.0, %v1559
    %1561 = vdwg.mxu0
    %1562 = vmatprep.subr.mxu0 %v428
    %1563 = vmatpush1.msra.mxu0 %v427
    %1564 = vmatprep.subr.mxu0 %v424
    %1565 = vmatpush1.msra.mxu0 %v423
    %1566 = vmatprep.subr.mxu0 %v420
    %1567 = vmatpush1.msra.mxu0 %v419
    %1568 = vmatprep.subr.mxu0 %v416
    %1569 = vmatpush1.msra.mxu0 %v415
    %1570 = vmatprep.subr.mxu0 %v412
    %1571 = vmatpush1.msra.mxu0 %v411
    %1572 = vmatprep.subr.mxu0 %v408
    %1573 = vmatpush1.msra.mxu0 %v407
    %1574 = vmatprep.subr.mxu0 %v404
    %1575 = vmatpush1.msra.mxu0 %v403
    %1576 = vmatprep.subr.mxu0 %v400
    %1577 = vmatpush1.msra.mxu0 %v399
    %1578 = vmatprep.subr.mxu0 %v396
    %1579 = vmatpush1.msra.mxu0 %v395
    %1580 = vmatprep.subr.mxu0 %v392
    %1581 = vmatpush1.msra.mxu0 %v391
    %1582 = vmatprep.subr.mxu0 %v388
    %1583 = vmatpush1.msra.mxu0 %v387
    %1584 = vmatprep.subr.mxu0 %v384
    %1585 = vmatpush1.msra.mxu0 %v383
    %1586 = vmatprep.subr.mxu0 %v380
    %1587 = vmatpush1.msra.mxu0 %v379
    %1588 = vmatprep.subr.mxu0 %v376
    %1589 = vmatpush1.msra.mxu0 %v375
    %1590 = vmatprep.subr.mxu0 %v372
    %1591 = vmatpush1.msra.mxu0 %v371
    %1592 = vmatprep.subr.mxu0 %v368
    %1593 = vmatpush1.msra.mxu0 %v367
    %1594 = vmatprep.subr.mxu0 0.0
    %1595 = vmatpush2.msra.mxu0 0.0
    %1596 = vmatprep.subr.mxu0 0.0
    %1597 = vmatpush2.msra.mxu0 0.0
    %1598 = vmatprep.subr.mxu0 0.0
    %1599 = vmatpush2.msra.mxu0 0.0
    %1600 = vmatprep.subr.mxu0 0.0
    %1601 = vmatpush2.msra.mxu0 0.0
    %1602 = vmatprep.subr.mxu0 0.0
    %1603 = vmatpush2.msra.mxu0 0.0
    %1604 = vmatprep.subr.mxu0 0.0
    %1605 = vmatpush2.msra.mxu0 0.0
    %1606 = vmatprep.subr.mxu0 0.0
    %1607 = vmatpush2.msra.mxu0 0.0
    %1608 = vmatprep.subr.mxu0 0.0
    %1609 = vmatpush2.msra.mxu0 0.0
    %1610 = vmatprep.subr.mxu0 0.0
    %1611 = vmatpush2.msra.mxu0 0.0
    %1612 = vmatprep.subr.mxu0 0.0
    %1613 = vmatpush2.msra.mxu0 0.0
    %1614 = vmatprep.subr.mxu0 0.0
    %1615 = vmatpush2.msra.mxu0 0.0
    %1616 = vmatprep.subr.mxu0 0.0
    %1617 = vmatpush2.msra.mxu0 0.0
    %1618 = vmatprep.subr.mxu0 0.0
    %1619 = vmatpush2.msra.mxu0 0.0
    %1620 = vmatprep.subr.mxu0 0.0
    %1621 = vmatpush2.msra.mxu0 0.0
    %1622 = vmatprep.subr.mxu0 0.0
    %1623 = vmatpush2.msra.mxu0 0.0
    %1624 = vmatprep.subr.mxu0 0.0
    %1625 = vmatpush2.msra.mxu0 0.0
    %1626 = vmatprep.mubr.f32.mxu0 0.0
    %1627 = vmatmul.mubr.f32.gmra.mxu0 %v1483
    %v1628 = vpop.f32.mrf.mxu0
    %v1629 = vadd.f32 0.0, %v1628
    %v1630 = vpop.f32.mrf.mxu0
    %v1631 = vadd.f32 0.0, %v1630
    %1632 = vdwg.mxu0
    %v1633 = vadd.f32 %v1487, %v1558
    %v1634 = vadd.f32 %v1488, %v1560
    %v1635 = vadd.f32 %v1489, %v1629
    %v1636 = vadd.f32 %v1490, %v1631
    %v1637 = vxor.u32 %v1633, 2147483648
    %v1638 = vmul.f32 %v1637, 1.442695
    %v1639 = vpow.pop %v1638
    %v1640 = vadd.f32 %v1639, 1.0
    %v1641 = vrcp.pop %v1640
    %v1642 = vmul.f32 1.0, %v1641
    %v1643 = vxor.u32 %v1634, 2147483648
    %v1644 = vmul.f32 %v1643, 1.442695
    %v1645 = vpow.pop %v1644
    %v1646 = vadd.f32 %v1645, 1.0
    %v1647 = vrcp.pop %v1646
    %v1648 = vmul.f32 1.0, %v1647
    %v1649 = vtanh.pop %v1635
    %v1650 = vxor.u32 %v1636, 2147483648
    %v1651 = vmul.f32 %v1650, 1.442695
    %v1652 = vpow.pop %v1651
    %v1653 = vadd.f32 %v1652, 1.0
    %v1654 = vrcp.pop %v1653
    %v1655 = vmul.f32 1.0, %v1654
    %v1656 = vmul.f32 %v1648, %v1481
    %v1657 = vmul.f32 %v1642, %v1649
    %v1658 = vadd.f32 %v1656, %v1657
    %v1659 = vtanh.pop %v1658
    %v1660 = vmul.f32 %v1655, %v1659
    %s1661 = smul.u32 7, 4
    %s1662 = smul.addr %s1661, 8
    %s1663 = scalar_lea.vmem [#allocation2], %s1662
    %v1664 = vld [vmem:[%s1663] sm:$0xff]
    %v1665 = vld [vmem:[%s1663 + $0x8] sm:$0xff]
    %v1666 = vld [vmem:[%s1663 + $0x10] sm:$0xff]
    %v1667 = vld [vmem:[%s1663 + $0x18] sm:$0xff]
    %1668 = vmatprep.subr.mxu0 %v426
    %1669 = vmatpush1.msra.mxu0 %v425
    %1670 = vmatprep.subr.mxu0 %v422
    %1671 = vmatpush1.msra.mxu0 %v421
    %1672 = vmatprep.subr.mxu0 %v418
    %1673 = vmatpush1.msra.mxu0 %v417
    %1674 = vmatprep.subr.mxu0 %v414
    %1675 = vmatpush1.msra.mxu0 %v413
    %1676 = vmatprep.subr.mxu0 %v410
    %1677 = vmatpush1.msra.mxu0 %v409
    %1678 = vmatprep.subr.mxu0 %v406
    %1679 = vmatpush1.msra.mxu0 %v405
    %1680 = vmatprep.subr.mxu0 %v402
    %1681 = vmatpush1.msra.mxu0 %v401
    %1682 = vmatprep.subr.mxu0 %v398
    %1683 = vmatpush1.msra.mxu0 %v397
    %1684 = vmatprep.subr.mxu0 %v394
    %1685 = vmatpush1.msra.mxu0 %v393
    %1686 = vmatprep.subr.mxu0 %v390
    %1687 = vmatpush1.msra.mxu0 %v389
    %1688 = vmatprep.subr.mxu0 %v386
    %1689 = vmatpush1.msra.mxu0 %v385
    %1690 = vmatprep.subr.mxu0 %v382
    %1691 = vmatpush1.msra.mxu0 %v381
    %1692 = vmatprep.subr.mxu0 %v378
    %1693 = vmatpush1.msra.mxu0 %v377
    %1694 = vmatprep.subr.mxu0 %v374
    %1695 = vmatpush1.msra.mxu0 %v373
    %1696 = vmatprep.subr.mxu0 %v370
    %1697 = vmatpush1.msra.mxu0 %v369
    %1698 = vmatprep.subr.mxu0 %v366
    %1699 = vmatpush1.msra.mxu0 %v365
    %1700 = vmatprep.subr.mxu0 0.0
    %1701 = vmatpush2.msra.mxu0 0.0
    %1702 = vmatprep.subr.mxu0 0.0
    %1703 = vmatpush2.msra.mxu0 0.0
    %1704 = vmatprep.subr.mxu0 0.0
    %1705 = vmatpush2.msra.mxu0 0.0
    %1706 = vmatprep.subr.mxu0 0.0
    %1707 = vmatpush2.msra.mxu0 0.0
    %1708 = vmatprep.subr.mxu0 0.0
    %1709 = vmatpush2.msra.mxu0 0.0
    %1710 = vmatprep.subr.mxu0 0.0
    %1711 = vmatpush2.msra.mxu0 0.0
    %1712 = vmatprep.subr.mxu0 0.0
    %1713 = vmatpush2.msra.mxu0 0.0
    %1714 = vmatprep.subr.mxu0 0.0
    %1715 = vmatpush2.msra.mxu0 0.0
    %1716 = vmatprep.subr.mxu0 0.0
    %1717 = vmatpush2.msra.mxu0 0.0
    %1718 = vmatprep.subr.mxu0 0.0
    %1719 = vmatpush2.msra.mxu0 0.0
    %1720 = vmatprep.subr.mxu0 0.0
    %1721 = vmatpush2.msra.mxu0 0.0
    %1722 = vmatprep.subr.mxu0 0.0
    %1723 = vmatpush2.msra.mxu0 0.0
    %1724 = vmatprep.subr.mxu0 0.0
    %1725 = vmatpush2.msra.mxu0 0.0
    %1726 = vmatprep.subr.mxu0 0.0
    %1727 = vmatpush2.msra.mxu0 0.0
    %1728 = vmatprep.subr.mxu0 0.0
    %1729 = vmatpush2.msra.mxu0 0.0
    %1730 = vmatprep.subr.mxu0 0.0
    %1731 = vmatpush2.msra.mxu0 0.0
    %1732 = vmatprep.mubr.f32.mxu0 0.0
    %1733 = vmatmul.mubr.f32.gmra.mxu0 %v1660
    %v1734 = vpop.f32.mrf.mxu0
    %v1735 = vadd.f32 0.0, %v1734
    %v1736 = vpop.f32.mrf.mxu0
    %v1737 = vadd.f32 0.0, %v1736
    %1738 = vdwg.mxu0
    %1739 = vmatprep.subr.mxu0 %v428
    %1740 = vmatpush1.msra.mxu0 %v427
    %1741 = vmatprep.subr.mxu0 %v424
    %1742 = vmatpush1.msra.mxu0 %v423
    %1743 = vmatprep.subr.mxu0 %v420
    %1744 = vmatpush1.msra.mxu0 %v419
    %1745 = vmatprep.subr.mxu0 %v416
    %1746 = vmatpush1.msra.mxu0 %v415
    %1747 = vmatprep.subr.mxu0 %v412
    %1748 = vmatpush1.msra.mxu0 %v411
    %1749 = vmatprep.subr.mxu0 %v408
    %1750 = vmatpush1.msra.mxu0 %v407
    %1751 = vmatprep.subr.mxu0 %v404
    %1752 = vmatpush1.msra.mxu0 %v403
    %1753 = vmatprep.subr.mxu0 %v400
    %1754 = vmatpush1.msra.mxu0 %v399
    %1755 = vmatprep.subr.mxu0 %v396
    %1756 = vmatpush1.msra.mxu0 %v395
    %1757 = vmatprep.subr.mxu0 %v392
    %1758 = vmatpush1.msra.mxu0 %v391
    %1759 = vmatprep.subr.mxu0 %v388
    %1760 = vmatpush1.msra.mxu0 %v387
    %1761 = vmatprep.subr.mxu0 %v384
    %1762 = vmatpush1.msra.mxu0 %v383
    %1763 = vmatprep.subr.mxu0 %v380
    %1764 = vmatpush1.msra.mxu0 %v379
    %1765 = vmatprep.subr.mxu0 %v376
    %1766 = vmatpush1.msra.mxu0 %v375
    %1767 = vmatprep.subr.mxu0 %v372
    %1768 = vmatpush1.msra.mxu0 %v371
    %1769 = vmatprep.subr.mxu0 %v368
    %1770 = vmatpush1.msra.mxu0 %v367
    %1771 = vmatprep.subr.mxu0 0.0
    %1772 = vmatpush2.msra.mxu0 0.0
    %1773 = vmatprep.subr.mxu0 0.0
    %1774 = vmatpush2.msra.mxu0 0.0
    %1775 = vmatprep.subr.mxu0 0.0
    %1776 = vmatpush2.msra.mxu0 0.0
    %1777 = vmatprep.subr.mxu0 0.0
    %1778 = vmatpush2.msra.mxu0 0.0
    %1779 = vmatprep.subr.mxu0 0.0
    %1780 = vmatpush2.msra.mxu0 0.0
    %1781 = vmatprep.subr.mxu0 0.0
    %1782 = vmatpush2.msra.mxu0 0.0
    %1783 = vmatprep.subr.mxu0 0.0
    %1784 = vmatpush2.msra.mxu0 0.0
    %1785 = vmatprep.subr.mxu0 0.0
    %1786 = vmatpush2.msra.mxu0 0.0
    %1787 = vmatprep.subr.mxu0 0.0
    %1788 = vmatpush2.msra.mxu0 0.0
    %1789 = vmatprep.subr.mxu0 0.0
    %1790 = vmatpush2.msra.mxu0 0.0
    %1791 = vmatprep.subr.mxu0 0.0
    %1792 = vmatpush2.msra.mxu0 0.0
    %1793 = vmatprep.subr.mxu0 0.0
    %1794 = vmatpush2.msra.mxu0 0.0
    %1795 = vmatprep.subr.mxu0 0.0
    %1796 = vmatpush2.msra.mxu0 0.0
    %1797 = vmatprep.subr.mxu0 0.0
    %1798 = vmatpush2.msra.mxu0 0.0
    %1799 = vmatprep.subr.mxu0 0.0
    %1800 = vmatpush2.msra.mxu0 0.0
    %1801 = vmatprep.subr.mxu0 0.0
    %1802 = vmatpush2.msra.mxu0 0.0
    %1803 = vmatprep.mubr.f32.mxu0 0.0
    %1804 = vmatmul.mubr.f32.gmra.mxu0 %v1660
    %v1805 = vpop.f32.mrf.mxu0
    %v1806 = vadd.f32 0.0, %v1805
    %v1807 = vpop.f32.mrf.mxu0
    %v1808 = vadd.f32 0.0, %v1807
    %1809 = vdwg.mxu0
    %v1810 = vadd.f32 %v1664, %v1735
    %v1811 = vadd.f32 %v1665, %v1737
    %v1812 = vadd.f32 %v1666, %v1806
    %v1813 = vadd.f32 %v1667, %v1808
    %v1814 = vxor.u32 %v1810, 2147483648
    %v1815 = vmul.f32 %v1814, 1.442695
    %v1816 = vpow.pop %v1815
    %v1817 = vadd.f32 %v1816, 1.0
    %v1818 = vrcp.pop %v1817
    %v1819 = vmul.f32 1.0, %v1818
    %v1820 = vxor.u32 %v1811, 2147483648
    %v1821 = vmul.f32 %v1820, 1.442695
    %v1822 = vpow.pop %v1821
    %v1823 = vadd.f32 %v1822, 1.0
    %v1824 = vrcp.pop %v1823
    %v1825 = vmul.f32 1.0, %v1824
    %v1826 = vtanh.pop %v1812
    %v1827 = vxor.u32 %v1813, 2147483648
    %v1828 = vmul.f32 %v1827, 1.442695
    %v1829 = vpow.pop %v1828
    %v1830 = vadd.f32 %v1829, 1.0
    %v1831 = vrcp.pop %v1830
    %v1832 = vmul.f32 1.0, %v1831
    %v1833 = vmul.f32 %v1825, %v1658
    %v1834 = vmul.f32 %v1819, %v1826
    %v1835 = vadd.f32 %v1833, %v1834
    %v1836 = vtanh.pop %v1835
    %v1837 = vmul.f32 %v1832, %v1836
    %v1838 = vld [vmem:[%s4] sm:$0xff]
    %v1839 = vld [vmem:[%s4 + $0x8] sm:$0xff]
    %v1840 = vld [vmem:[%s4 + $0x10] sm:$0xff]
    %v1841 = vld [vmem:[%s4 + $0x18] sm:$0xff]
    %v1842 = vld [vmem:[%s4 + $0x20] sm:$0xff]
    %v1843 = vld [vmem:[%s4 + $0x28] sm:$0xff]
    %v1844 = vld [vmem:[%s4 + $0x30] sm:$0xff]
    %v1845 = vld [vmem:[%s4 + $0x38] sm:$0xff]
    %v1846 = vld [vmem:[%s4 + $0x40] sm:$0xff]
    %v1847 = vld [vmem:[%s4 + $0x48] sm:$0xff]
    %v1848 = vld [vmem:[%s4 + $0x50] sm:$0xff]
    %v1849 = vld [vmem:[%s4 + $0x58] sm:$0xff]
    %v1850 = vld [vmem:[%s4 + $0x60] sm:$0xff]
    %v1851 = vld [vmem:[%s4 + $0x68] sm:$0xff]
    %v1852 = vld [vmem:[%s4 + $0x70] sm:$0xff]
    %v1853 = vld [vmem:[%s4 + $0x78] sm:$0xff]
    %v1854 = vld [vmem:[%s5] sm:$0x1]
    %v1856 = vlaneseq
    %v1857 = vshrl.u32 %v1856, 7
    %v1858 = vsub.s32 0, %v1857
    %v1859 = vrot.slane %v1854, %v1858
    %1861 = vmatprep.subr.mxu0 0.0
    %1862 = vmatpush1.msra.mxu0 %v1853
    %1863 = vmatprep.subr.mxu0 0.0
    %1864 = vmatpush1.msra.mxu0 %v1852
    %1865 = vmatprep.subr.mxu0 0.0
    %1866 = vmatpush1.msra.mxu0 %v1851
    %1867 = vmatprep.subr.mxu0 0.0
    %1868 = vmatpush1.msra.mxu0 %v1850
    %1869 = vmatprep.subr.mxu0 0.0
    %1870 = vmatpush1.msra.mxu0 %v1849
    %1871 = vmatprep.subr.mxu0 0.0
    %1872 = vmatpush1.msra.mxu0 %v1848
    %1873 = vmatprep.subr.mxu0 0.0
    %1874 = vmatpush1.msra.mxu0 %v1847
    %1875 = vmatprep.subr.mxu0 0.0
    %1876 = vmatpush1.msra.mxu0 %v1846
    %1877 = vmatprep.subr.mxu0 0.0
    %1878 = vmatpush1.msra.mxu0 %v1845
    %1879 = vmatprep.subr.mxu0 0.0
    %1880 = vmatpush1.msra.mxu0 %v1844
    %1881 = vmatprep.subr.mxu0 0.0
    %1882 = vmatpush1.msra.mxu0 %v1843
    %1883 = vmatprep.subr.mxu0 0.0
    %1884 = vmatpush1.msra.mxu0 %v1842
    %1885 = vmatprep.subr.mxu0 0.0
    %1886 = vmatpush1.msra.mxu0 %v1841
    %1887 = vmatprep.subr.mxu0 0.0
    %1888 = vmatpush1.msra.mxu0 %v1840
    %1889 = vmatprep.subr.mxu0 0.0
    %1890 = vmatpush1.msra.mxu0 %v1839
    %1891 = vmatprep.subr.mxu0 0.0
    %1892 = vmatpush1.msra.mxu0 %v1838
    %1893 = vmatprep.subr.mxu0 0.0
    %1894 = vmatpush2.msra.mxu0 0.0
    %1895 = vmatprep.subr.mxu0 0.0
    %1896 = vmatpush2.msra.mxu0 0.0
    %1897 = vmatprep.subr.mxu0 0.0
    %1898 = vmatpush2.msra.mxu0 0.0
    %1899 = vmatprep.subr.mxu0 0.0
    %1900 = vmatpush2.msra.mxu0 0.0
    %1901 = vmatprep.subr.mxu0 0.0
    %1902 = vmatpush2.msra.mxu0 0.0
    %1903 = vmatprep.subr.mxu0 0.0
    %1904 = vmatpush2.msra.mxu0 0.0
    %1905 = vmatprep.subr.mxu0 0.0
    %1906 = vmatpush2.msra.mxu0 0.0
    %1907 = vmatprep.subr.mxu0 0.0
    %1908 = vmatpush2.msra.mxu0 0.0
    %1909 = vmatprep.subr.mxu0 0.0
    %1910 = vmatpush2.msra.mxu0 0.0
    %1911 = vmatprep.subr.mxu0 0.0
    %1912 = vmatpush2.msra.mxu0 0.0
    %1913 = vmatprep.subr.mxu0 0.0
    %1914 = vmatpush2.msra.mxu0 0.0
    %1915 = vmatprep.subr.mxu0 0.0
    %1916 = vmatpush2.msra.mxu0 0.0
    %1917 = vmatprep.subr.mxu0 0.0
    %1918 = vmatpush2.msra.mxu0 0.0
    %1919 = vmatprep.subr.mxu0 0.0
    %1920 = vmatpush2.msra.mxu0 0.0
    %1921 = vmatprep.subr.mxu0 0.0
    %1922 = vmatpush2.msra.mxu0 0.0
    %1923 = vmatprep.subr.mxu0 0.0
    %1924 = vmatpush2.msra.mxu0 0.0
    %1925 = vmatprep.mubr.f32.mxu0 0.0
    %1926 = vmatmul.mubr.f32.gmra.mxu0 %v1837
    %v1927 = vpop.f32.mrf.mxu0
    %v1928 = vadd.f32 %v1859, %v1927
    %v1929 = vpop.f32.mrf.mxu0
    %1930 = vdwg.mxu0
    %vm1931 = vcmask 31744
    %1932 = vst.msk [vmem:[%s6] sm:$0xff] %vm1931, %v1928
    // Predicated region
    $region30: #{tpu_custom_call.1} parent=1 // pred_check
      _
    $region31: #{tpu_custom_call.1} parent=1 // pred_check_branch
      %1934 = sbr.rel (0) target = $region33
    $region32: #{tpu_custom_call.1} parent=1 // pred_region
      _
    $region33: #{tpu_custom_call.1} parent=1 // pred_fallthru
      _
    // Predicated region
    $region34: #{tpu_custom_call.1} parent=1 // pred_check
      _
    $region35: #{tpu_custom_call.1} parent=1 // pred_check_branch
      %1936 = sbr.rel (0) target = $region37
    $region36: #{tpu_custom_call.1} parent=1 // pred_region
      _
    $region37: #{tpu_custom_call.1} parent=1 // pred_fallthru
      _
    %1937 = vsyncpa [#allocation4], 1

</llo_original>
